<compile_context>
chip_gen: v6e
topology: v6e:2x2x1
jax: 0.10.0
libtpu: 0.0.40
codegen_flags: <defaults>
</compile_context>

<pallas_src>
import functools

import jax
import jax.numpy as jnp
from jax import lax
from jax.experimental import pallas as pl
from jax.experimental.pallas import tpu as pltpu


def _round_up(x, m):
    return (x + m - 1) // m * m


def _cdiv(a, b):
    return (a + b - 1) // b


def _dcn_fused_kernel(x_ref, vg_ref, c_ref, u_ref, b_ref, o_ref, *,
                      num_layers, num_experts, low_rank, kr, matmul_dtype):
    f32 = jnp.float32
    K, r, KR = num_experts, low_rank, kr

    # Weights (b operand) are pre-cast to matmul_dtype in the wrapper; only the
    # f32 activations are cast here (once per use).
    def mm_t(a, b):   # (M, C) x (N, C) -> (M, N)   == a @ b.T, no transpose op
        return lax.dot_general(a.astype(matmul_dtype), b,
                               (((1,), (1,)), ((), ())),
                               preferred_element_type=f32)

    def mm_n(a, b):   # (M, C) x (C, N) -> (M, N)
        return lax.dot_general(a.astype(matmul_dtype), b,
                               (((1,), (0,)), ((), ())),
                               preferred_element_type=f32)

    x0 = x_ref[...].astype(f32)          # (TB, Np)
    x_l = x0
    TB = x0.shape[0]
    KRVp = vg_ref.shape[1]

    if K > 1:
        # Lane masks for the gate -> per-expert-column expansion.  VPU/XLU only
        # (no MXU pass), hoisted out of the layer loop.
        lane = lax.broadcasted_iota(jnp.int32, (TB, KRVp), 1)
        sel = [jnp.logical_and(lane >= i * r, lane < (i + 1) * r).astype(f32)
               for i in range(K)]

    # Static unroll over layers (L is small); per-layer weight slices keep live
    # ranges short.  TODO(synk): switch to lax.fori_loop + dynamic ref indexing
    # if num_layers grows large.
    for layer in range(num_layers):
        vg_l = vg_ref[layer]             # (KRVp, Np): rows [0:KR]=V, [KR:KR+K]=gate_w, rest 0
        c_l = c_ref[layer]               # (KRVp, KRVp): block-diagonal experts, 0 elsewhere
        u_l = u_ref[layer]               # (KRVp, Np): row-block i = U_i^T, rest 0
        b_l = b_ref[layer].astype(f32)   # (1, Np)

        # One MXU pass for ALL expert V projections AND the gate logits.
        e = mm_t(x_l, vg_l)              # (TB, KRVp)

        if K > 1:
            logits = e[:, KR:KR + K]                          # (TB, K)
            logits = logits - jnp.max(logits, axis=1, keepdims=True)
            ex = jnp.exp(logits)
            s = jnp.sum(ex, axis=1, keepdims=True)
            inv = pl.reciprocal(s, approx=True)               # EUP slot
            inv = inv * (2.0 - s * inv)                       # one Newton step (~f32 exact)
            gate = ex * inv                                   # (TB, K) softmax over experts

        # Block-diagonal C keeps experts separate; gate-logit / padding columns
        # are mapped to zero (their C rows/cols are zero).
        # TODO(synk): if KRVp exceeds one MXU tile width (128 on v5e, 256 on
        # v6e/v7x), split this stage back into per-expert (TB,r)x(r,r) matmuls.
        e = mm_t(jnp.maximum(e, 0.0), c_l)                    # (TB, KRVp)
        e = jnp.maximum(e, 0.0)

        if K > 1:
            # Lane-side gate expansion: column block i*r:(i+1)*r scaled by
            # gate[:, i].  Padded / gate-logit columns of `e` are already zero.
            gate_full = sel[0] * gate[:, 0:1]
            for i in range(1, K):
                gate_full = gate_full + sel[i] * gate[:, i:i + 1]
            e = e * gate_full

        out = mm_n(e, u_l)               # (TB, Np): sum over experts is implicit
        x_l = x0 * (out + b_l) + x_l     # MoE + residual  (sum_i gate_i = 1)

    o_ref[...] = x_l.astype(o_ref.dtype)


def low_rank_mixture_cross_net(x, U, V, C, bias, gate_w, *,
                               block_batch=None,
                               pad_features_to_lanes=True,
                               matmul_dtype=jnp.bfloat16):
    """x: (B, N). U: (L,K,N,r), V: (L,K,r,N), C: (L,K,r,r), bias: (L,N),
    gate_w: (K, N) or None (only used when K > 1). Returns (B, N)."""
    B, N = x.shape
    L, K, _, r = U.shape
    KR = K * r
    if gate_w is None:
        gate_w = jnp.zeros((K, N), dtype=jnp.float32)

    # ---- generation-aware defaults ----
    try:
        _vmem_cap = pltpu.get_tpu_info().vmem_capacity_bytes
    except Exception:
        _vmem_cap = 128 << 20
    if block_batch is None:
        # 128 MiB VMEM (v5e/v6e): 512-row tiles; 64 MiB (v7x): 256-row tiles.
        block_batch = 512 if _vmem_cap >= (96 << 20) else 256

    # ---- parameter re-packing (tiny, done outside the kernel) ----
    lanes = 128
    n_gate = K if K > 1 else 0
    KRVp = _round_up(KR + n_gate, lanes)   # lane-dense expert intermediate

    vg = jnp.zeros((L, KRVp, N), dtype=jnp.float32)
    vg = vg.at[:, :KR, :].set(V.reshape(L, KR, N).astype(jnp.float32))
    if K > 1:   # fold the gate projection into the V contraction
        gw = jnp.broadcast_to(gate_w.astype(jnp.float32)[None], (L, K, N))
        vg = vg.at[:, KR:KR + K, :].set(gw)

    u_cat = jnp.zeros((L, KRVp, N), dtype=jnp.float32)
    u_cat = u_cat.at[:, :KR, :].set(
        jnp.swapaxes(U, 2, 3).reshape(L, KR, N).astype(jnp.float32))

    c_bd = jnp.zeros((L, KRVp, KRVp), dtype=jnp.float32)
    for i in range(K):
        c_bd = c_bd.at[:, i * r:(i + 1) * r, i * r:(i + 1) * r].set(
            C[:, i].astype(jnp.float32))

    # ---- lane-dense feature padding (exact: padded columns stay zero) ----
    Np = _round_up(N, lanes) if pad_features_to_lanes else N

    def pad_last(a):
        if Np == N:
            return a
        cfg = [(0, 0)] * (a.ndim - 1) + [(0, Np - N)]
        return jnp.pad(a, cfg)

    x_p = pad_last(x)
    vg = pad_last(vg).astype(matmul_dtype)        # pre-cast weights to MXU dtype
    u_cat = pad_last(u_cat).astype(matmul_dtype)
    c_bd = c_bd.astype(matmul_dtype)
    bias_p = pad_last(bias.astype(x.dtype)).reshape(L, 1, Np)

    # ---- balanced batch tiling (multiple of 8, >= 2 tiles for v7x dual-TC) ----
    min_tiles = 2 if B > 8 else 1
    n_tiles = max(_cdiv(B, block_batch), min_tiles)
    TB = _round_up(_cdiv(B, n_tiles), 8)
    Bp = n_tiles * TB
    if Bp != B:
        x_p = jnp.pad(x_p, ((0, Bp - B), (0, 0)))

    # ---- VMEM budget estimate (weights + double-buffered I/O + live f32) ----
    md_bytes = jnp.dtype(matmul_dtype).itemsize
    weight_bytes = (L * (2 * KRVp * Np + KRVp * KRVp) * md_bytes
                    + L * Np * x.dtype.itemsize)
    io_bytes = 2 * 2 * TB * Np * x.dtype.itemsize        # double-buffered x/out tiles
    live_bytes = 6 * TB * max(Np, KRVp) * 4              # f32 temporaries in the body
    est = 2 * weight_bytes + io_bytes + live_bytes + (4 << 20)
    vmem_limit = int(min(max(est, 32 << 20), _vmem_cap * 3 // 4))

    kernel = functools.partial(_dcn_fused_kernel, num_layers=L, num_experts=K,
                               low_rank=r, kr=KR, matmul_dtype=matmul_dtype)

    def build(single_buffer_weights):
        def weight_spec(shape):
            idx = lambda b: (0,) * len(shape)
            if single_buffer_weights:
                # Grid-invariant blocks: no need to double-buffer them.
                return pl.BlockSpec(shape, idx, pipeline_mode=pl.Buffered(1))
            return pl.BlockSpec(shape, idx)

        return pl.pallas_call(
            kernel,
            out_shape=jax.ShapeDtypeStruct((Bp, Np), x.dtype),
            grid_spec=pltpu.PrefetchScalarGridSpec(
                num_scalar_prefetch=0,
                grid=(n_tiles,),
                in_specs=[
                    pl.BlockSpec((TB, Np), lambda b: (b, 0)),   # x tile
                    weight_spec((L, KRVp, Np)),                 # stacked V (+ gate rows)
                    weight_spec((L, KRVp, KRVp)),               # block-diagonal C
                    weight_spec((L, KRVp, Np)),                 # stacked U^T
                    weight_spec((L, 1, Np)),                    # bias
                ],
                out_specs=pl.BlockSpec((TB, Np), lambda b: (b, 0)),
            ),
            compiler_params=pltpu.CompilerParams(
                dimension_semantics=("parallel",),
                vmem_limit_bytes=vmem_limit),
        )

    args = (x_p, vg, c_bd, u_cat, bias_p)
    try:
        out = build(True)(*args)
    except Exception:
        # Installed Pallas rejected single-buffered (Buffered(1)) weight blocks;
        # fall back to the default double-buffered pipeline.
        out = build(False)(*args)

    return out[:B, :N]


def _reference(x, U, V, C, bias, gate_w):
    """Pure-JAX replica of the PyTorch forward (for correctness check)."""
    L, K, N, r = U.shape
    x0 = x
    x_l = x
    for layer in range(L):
        if K > 1:
            logits = x_l @ gate_w.T                          # (B, K)
            gate = jax.nn.softmax(logits, axis=1)
        experts = []
        for i in range(K):
            e = x_l @ V[layer, i].T                          # (B, r)
            e = jax.nn.relu(e) @ C[layer, i].T               # (B, r)
            e = jax.nn.relu(e) @ U[layer, i].T               # (B, N)
            experts.append(x0 * (e + bias[layer][None, :]))
        experts = jnp.stack(experts, axis=2)                 # (B, N, K)
        if K > 1:
            moe = jnp.einsum("bnk,bk->bn", experts, gate)
            x_l = moe + x_l
        else:
            x_l = experts[..., 0] + x_l
    return x_l


if __name__ == "__main__":
    batch = 16
    in_features = 32
    num_layers = 2
    num_experts = 3
    low_rank = 4

    key = jax.random.PRNGKey(0)
    kx, ku, kv, kc, kg = jax.random.split(key, 5)

    x = jax.random.normal(kx, (batch, in_features), dtype=jnp.float32)

    # Deterministic synthetic parameters (xavier-like scales; not a checkpoint).
    std_uv = (2.0 / (in_features + low_rank)) ** 0.5
    std_c = (2.0 / (low_rank + low_rank)) ** 0.5
    U = std_uv * jax.random.normal(
        ku, (num_layers, num_experts, in_features, low_rank), dtype=jnp.float32)
    V = std_uv * jax.random.normal(
        kv, (num_layers, num_experts, low_rank, in_features), dtype=jnp.float32)
    C = std_c * jax.random.normal(
        kc, (num_layers, num_experts, low_rank, low_rank), dtype=jnp.float32)
    bias = jnp.zeros((num_layers, in_features), dtype=jnp.float32)
    gate_w = 0.1 * jax.random.normal(
        kg, (num_experts, in_features), dtype=jnp.float32)

    ref = _reference(x, U, V, C, bias, gate_w)

    # f32 MXU path: tight check vs the pure-JAX reference.
    out_f32 = jax.block_until_ready(
        low_rank_mixture_cross_net(x, U, V, C, bias, gate_w,
                                   matmul_dtype=jnp.float32))
    assert out_f32.shape == (batch, in_features)
    assert jnp.allclose(out_f32, ref, atol=1e-4, rtol=1e-4), \
        "mismatch vs JAX reference (K=3, f32)"

    # Production default (bf16 MXU operands, f32 accumulate): loose tolerance
    # accounts for bf16 input rounding only.
    out_bf16 = jax.block_until_ready(
        low_rank_mixture_cross_net(x, U, V, C, bias, gate_w))
    assert out_bf16.shape == (batch, in_features)
    assert jnp.allclose(out_bf16, ref, atol=2.5e-1, rtol=5e-2), \
        "mismatch vs JAX reference (K=3, bf16)"

    # Single-expert path (module default: gating skipped).
    U1, V1, C1 = U[:, :1], V[:, :1], C[:, :1]
    ref1 = _reference(x, U1, V1, C1, bias, None)
    out1 = jax.block_until_ready(
        low_rank_mixture_cross_net(x, U1, V1, C1, bias, None,
                                   matmul_dtype=jnp.float32))
    assert jnp.allclose(out1, ref1, atol=1e-4, rtol=1e-4), \
        "mismatch vs JAX reference (K=1)"

    print("KERNEL_OK")
</pallas_src>

<mosaic_0001>
module attributes {stable_mosaic.version = 11 : i64} {
  func.func @_dcn_fused_kernel(%arg0: i32, %arg1: memref<8x128xf32, #tpu.memory_space<vmem>>, %arg2: memref<2x128x128xf32, #tpu.memory_space<vmem>>, %arg3: memref<2x128x128xf32, #tpu.memory_space<vmem>>, %arg4: memref<2x128x128xf32, #tpu.memory_space<vmem>>, %arg5: memref<2x1x128xf32, #tpu.memory_space<vmem>>, %arg6: memref<8x128xf32, #tpu.memory_space<vmem>>) attributes {dimension_semantics = [#tpu.dimension_semantics<parallel>], iteration_bounds = array<i64: 2>, scalar_prefetch = 0 : i64, scratch_operands = 0 : i64, tpu.core_type = #tpu.core_type<tc>, window_params = [{transform_indices = @transform_0, window_bounds = array<i64: 8, 128>}, {pipeline_mode = #tpu.pipeline_mode<synchronous>, transform_indices = @transform_1, window_bounds = array<i64: 2, 128, 128>}, {pipeline_mode = #tpu.pipeline_mode<synchronous>, transform_indices = @transform_2, window_bounds = array<i64: 2, 128, 128>}, {pipeline_mode = #tpu.pipeline_mode<synchronous>, transform_indices = @transform_3, window_bounds = array<i64: 2, 128, 128>}, {pipeline_mode = #tpu.pipeline_mode<synchronous>, transform_indices = @transform_4, window_bounds = array<i64: 2, 1, 128>}, {transform_indices = @transform_5, window_bounds = array<i64: 8, 128>}]} {
    %c0 = arith.constant 0 : index
    %c0_0 = arith.constant 0 : index
    %0 = vector.load %arg1[%c0, %c0_0] : memref<8x128xf32, #tpu.memory_space<vmem>>, vector<8x128xf32>
    %1 = tpu.iota {dimensions = array<i32: 1>} : vector<8x128xi32>
    %c0_i32 = arith.constant 0 : i32
    %2 = vector.broadcast %c0_i32 : i32 to vector<8x128xi32>
    %3 = arith.cmpi sge, %1, %2 : vector<8x128xi32>
    %c4_i32 = arith.constant 4 : i32
    %4 = vector.broadcast %c4_i32 : i32 to vector<8x128xi32>
    %5 = arith.cmpi slt, %1, %4 : vector<8x128xi32>
    %6 = arith.andi %3, %5 : vector<8x128xi1>
    %7 = arith.extui %6 : vector<8x128xi1> to vector<8x128xi32>
    %8 = arith.sitofp %7 : vector<8x128xi32> to vector<8x128xf32>
    %c4_i32_1 = arith.constant 4 : i32
    %9 = vector.broadcast %c4_i32_1 : i32 to vector<8x128xi32>
    %10 = arith.cmpi sge, %1, %9 : vector<8x128xi32>
    %c8_i32 = arith.constant 8 : i32
    %11 = vector.broadcast %c8_i32 : i32 to vector<8x128xi32>
    %12 = arith.cmpi slt, %1, %11 : vector<8x128xi32>
    %13 = arith.andi %10, %12 : vector<8x128xi1>
    %14 = arith.extui %13 : vector<8x128xi1> to vector<8x128xi32>
    %15 = arith.sitofp %14 : vector<8x128xi32> to vector<8x128xf32>
    %c8_i32_2 = arith.constant 8 : i32
    %16 = vector.broadcast %c8_i32_2 : i32 to vector<8x128xi32>
    %17 = arith.cmpi sge, %1, %16 : vector<8x128xi32>
    %c12_i32 = arith.constant 12 : i32
    %18 = vector.broadcast %c12_i32 : i32 to vector<8x128xi32>
    %19 = arith.cmpi slt, %1, %18 : vector<8x128xi32>
    %20 = arith.andi %17, %19 : vector<8x128xi1>
    %21 = arith.extui %20 : vector<8x128xi1> to vector<8x128xi32>
    %22 = arith.sitofp %21 : vector<8x128xi32> to vector<8x128xf32>
    %c0_3 = arith.constant 0 : index
    %c0_4 = arith.constant 0 : index
    %c0_5 = arith.constant 0 : index
    %23 = vector.load %arg2[%c0_3, %c0_4, %c0_5] : memref<2x128x128xf32, #tpu.memory_space<vmem>>, vector<1x128x128xf32>
    %24 = vector.shape_cast %23 : vector<1x128x128xf32> to vector<128x128xf32>
    %c0_6 = arith.constant 0 : index
    %c0_7 = arith.constant 0 : index
    %c0_8 = arith.constant 0 : index
    %25 = vector.load %arg3[%c0_6, %c0_7, %c0_8] : memref<2x128x128xf32, #tpu.memory_space<vmem>>, vector<1x128x128xf32>
    %26 = vector.shape_cast %25 : vector<1x128x128xf32> to vector<128x128xf32>
    %c0_9 = arith.constant 0 : index
    %c0_10 = arith.constant 0 : index
    %c0_11 = arith.constant 0 : index
    %27 = vector.load %arg4[%c0_9, %c0_10, %c0_11] : memref<2x128x128xf32, #tpu.memory_space<vmem>>, vector<1x128x128xf32>
    %28 = vector.shape_cast %27 : vector<1x128x128xf32> to vector<128x128xf32>
    %c0_12 = arith.constant 0 : index
    %c0_13 = arith.constant 0 : index
    %c0_14 = arith.constant 0 : index
    %29 = vector.load %arg5[%c0_12, %c0_13, %c0_14] : memref<2x1x128xf32, #tpu.memory_space<vmem>>, vector<1x1x128xf32>
    %30 = vector.shape_cast %29 : vector<1x1x128xf32> to vector<1x128xf32>
    %cst = arith.constant dense<0.000000e+00> : vector<8x128xf32>
    %31 = tpu.matmul %0, %24, %cst {dimension_numbers = #tpu.dot_dimension_numbers<[1], [1], [0], [0], [0, 0, 1, 0], [], []>} : vector<8x128xf32>, vector<128x128xf32>, vector<8x128xf32> -> vector<8x128xf32>
    %32 = vector.extract_strided_slice %31 {offsets = [0, 12], sizes = [8, 3], strides = [1, 1]} : vector<8x128xf32> to vector<8x3xf32>
    %cst_15 = arith.constant dense<0xFF800000> : vector<8xf32>
    %33 = vector.multi_reduction <maximumf>, %32, %cst_15 [1] : vector<8x3xf32> to vector<8xf32>
    %34 = vector.shape_cast %33 : vector<8xf32> to vector<8x1xf32>
    %35 = vector.broadcast %34 : vector<8x1xf32> to vector<8x3xf32>
    %36 = arith.subf %32, %35 : vector<8x3xf32>
    %37 = math.exp %36 : vector<8x3xf32>
    %cst_16 = arith.constant dense<0.000000e+00> : vector<8xf32>
    %38 = vector.multi_reduction <add>, %37, %cst_16 [1] : vector<8x3xf32> to vector<8xf32>
    %39 = vector.shape_cast %38 : vector<8xf32> to vector<8x1xf32>
    %40 = tpu.reciprocal %39 {approx = true} : vector<8x1xf32> -> vector<8x1xf32>
    %41 = arith.mulf %39, %40 : vector<8x1xf32>
    %cst_17 = arith.constant 2.000000e+00 : f32
    %42 = vector.broadcast %cst_17 : f32 to vector<8x1xf32>
    %43 = arith.subf %42, %41 : vector<8x1xf32>
    %44 = arith.mulf %40, %43 : vector<8x1xf32>
    %45 = vector.broadcast %44 : vector<8x1xf32> to vector<8x3xf32>
    %46 = arith.mulf %37, %45 : vector<8x3xf32>
    %cst_18 = arith.constant 0.000000e+00 : f32
    %47 = vector.broadcast %cst_18 : f32 to vector<8x128xf32>
    %48 = arith.maximumf %31, %47 : vector<8x128xf32>
    %cst_19 = arith.constant dense<0.000000e+00> : vector<8x128xf32>
    %49 = tpu.matmul %48, %26, %cst_19 {dimension_numbers = #tpu.dot_dimension_numbers<[1], [1], [0], [0], [0, 0, 1, 0], [], []>} : vector<8x128xf32>, vector<128x128xf32>, vector<8x128xf32> -> vector<8x128xf32>
    %cst_20 = arith.constant 0.000000e+00 : f32
    %50 = vector.broadcast %cst_20 : f32 to vector<8x128xf32>
    %51 = arith.maximumf %49, %50 : vector<8x128xf32>
    %52 = vector.extract_strided_slice %46 {offsets = [0, 0], sizes = [8, 1], strides = [1, 1]} : vector<8x3xf32> to vector<8x1xf32>
    %53 = vector.broadcast %52 : vector<8x1xf32> to vector<8x128xf32>
    %54 = arith.mulf %8, %53 : vector<8x128xf32>
    %55 = vector.extract_strided_slice %46 {offsets = [0, 1], sizes = [8, 1], strides = [1, 1]} : vector<8x3xf32> to vector<8x1xf32>
    %56 = vector.broadcast %55 : vector<8x1xf32> to vector<8x128xf32>
    %57 = arith.mulf %15, %56 : vector<8x128xf32>
    %58 = arith.addf %54, %57 : vector<8x128xf32>
    %59 = vector.extract_strided_slice %46 {offsets = [0, 2], sizes = [8, 1], strides = [1, 1]} : vector<8x3xf32> to vector<8x1xf32>
    %60 = vector.broadcast %59 : vector<8x1xf32> to vector<8x128xf32>
    %61 = arith.mulf %22, %60 : vector<8x128xf32>
    %62 = arith.addf %58, %61 : vector<8x128xf32>
    %63 = arith.mulf %51, %62 : vector<8x128xf32>
    %cst_21 = arith.constant dense<0.000000e+00> : vector<8x128xf32>
    %64 = tpu.matmul %63, %28, %cst_21 {dimension_numbers = #tpu.dot_dimension_numbers<[1], [0], [0], [1], [0, 0, 1, 1], [], []>} : vector<8x128xf32>, vector<128x128xf32>, vector<8x128xf32> -> vector<8x128xf32>
    %65 = vector.broadcast %30 : vector<1x128xf32> to vector<8x128xf32>
    %66 = arith.addf %64, %65 : vector<8x128xf32>
    %67 = arith.mulf %0, %66 : vector<8x128xf32>
    %68 = arith.addf %67, %0 : vector<8x128xf32>
    %c1 = arith.constant 1 : index
    %c0_22 = arith.constant 0 : index
    %c0_23 = arith.constant 0 : index
    %69 = vector.load %arg2[%c1, %c0_22, %c0_23] : memref<2x128x128xf32, #tpu.memory_space<vmem>>, vector<1x128x128xf32>
    %70 = vector.shape_cast %69 : vector<1x128x128xf32> to vector<128x128xf32>
    %c1_24 = arith.constant 1 : index
    %c0_25 = arith.constant 0 : index
    %c0_26 = arith.constant 0 : index
    %71 = vector.load %arg3[%c1_24, %c0_25, %c0_26] : memref<2x128x128xf32, #tpu.memory_space<vmem>>, vector<1x128x128xf32>
    %72 = vector.shape_cast %71 : vector<1x128x128xf32> to vector<128x128xf32>
    %c1_27 = arith.constant 1 : index
    %c0_28 = arith.constant 0 : index
    %c0_29 = arith.constant 0 : index
    %73 = vector.load %arg4[%c1_27, %c0_28, %c0_29] : memref<2x128x128xf32, #tpu.memory_space<vmem>>, vector<1x128x128xf32>
    %74 = vector.shape_cast %73 : vector<1x128x128xf32> to vector<128x128xf32>
    %c1_30 = arith.constant 1 : index
    %c0_31 = arith.constant 0 : index
    %c0_32 = arith.constant 0 : index
    %75 = vector.load %arg5[%c1_30, %c0_31, %c0_32] : memref<2x1x128xf32, #tpu.memory_space<vmem>>, vector<1x1x128xf32>
    %76 = vector.shape_cast %75 : vector<1x1x128xf32> to vector<1x128xf32>
    %cst_33 = arith.constant dense<0.000000e+00> : vector<8x128xf32>
    %77 = tpu.matmul %68, %70, %cst_33 {dimension_numbers = #tpu.dot_dimension_numbers<[1], [1], [0], [0], [0, 0, 1, 0], [], []>} : vector<8x128xf32>, vector<128x128xf32>, vector<8x128xf32> -> vector<8x128xf32>
    %78 = vector.extract_strided_slice %77 {offsets = [0, 12], sizes = [8, 3], strides = [1, 1]} : vector<8x128xf32> to vector<8x3xf32>
    %cst_34 = arith.constant dense<0xFF800000> : vector<8xf32>
    %79 = vector.multi_reduction <maximumf>, %78, %cst_34 [1] : vector<8x3xf32> to vector<8xf32>
    %80 = vector.shape_cast %79 : vector<8xf32> to vector<8x1xf32>
    %81 = vector.broadcast %80 : vector<8x1xf32> to vector<8x3xf32>
    %82 = arith.subf %78, %81 : vector<8x3xf32>
    %83 = math.exp %82 : vector<8x3xf32>
    %cst_35 = arith.constant dense<0.000000e+00> : vector<8xf32>
    %84 = vector.multi_reduction <add>, %83, %cst_35 [1] : vector<8x3xf32> to vector<8xf32>
    %85 = vector.shape_cast %84 : vector<8xf32> to vector<8x1xf32>
    %86 = tpu.reciprocal %85 {approx = true} : vector<8x1xf32> -> vector<8x1xf32>
    %87 = arith.mulf %85, %86 : vector<8x1xf32>
    %cst_36 = arith.constant 2.000000e+00 : f32
    %88 = vector.broadcast %cst_36 : f32 to vector<8x1xf32>
    %89 = arith.subf %88, %87 : vector<8x1xf32>
    %90 = arith.mulf %86, %89 : vector<8x1xf32>
    %91 = vector.broadcast %90 : vector<8x1xf32> to vector<8x3xf32>
    %92 = arith.mulf %83, %91 : vector<8x3xf32>
    %cst_37 = arith.constant 0.000000e+00 : f32
    %93 = vector.broadcast %cst_37 : f32 to vector<8x128xf32>
    %94 = arith.maximumf %77, %93 : vector<8x128xf32>
    %cst_38 = arith.constant dense<0.000000e+00> : vector<8x128xf32>
    %95 = tpu.matmul %94, %72, %cst_38 {dimension_numbers = #tpu.dot_dimension_numbers<[1], [1], [0], [0], [0, 0, 1, 0], [], []>} : vector<8x128xf32>, vector<128x128xf32>, vector<8x128xf32> -> vector<8x128xf32>
    %cst_39 = arith.constant 0.000000e+00 : f32
    %96 = vector.broadcast %cst_39 : f32 to vector<8x128xf32>
    %97 = arith.maximumf %95, %96 : vector<8x128xf32>
    %98 = vector.extract_strided_slice %92 {offsets = [0, 0], sizes = [8, 1], strides = [1, 1]} : vector<8x3xf32> to vector<8x1xf32>
    %99 = vector.broadcast %98 : vector<8x1xf32> to vector<8x128xf32>
    %100 = arith.mulf %8, %99 : vector<8x128xf32>
    %101 = vector.extract_strided_slice %92 {offsets = [0, 1], sizes = [8, 1], strides = [1, 1]} : vector<8x3xf32> to vector<8x1xf32>
    %102 = vector.broadcast %101 : vector<8x1xf32> to vector<8x128xf32>
    %103 = arith.mulf %15, %102 : vector<8x128xf32>
    %104 = arith.addf %100, %103 : vector<8x128xf32>
    %105 = vector.extract_strided_slice %92 {offsets = [0, 2], sizes = [8, 1], strides = [1, 1]} : vector<8x3xf32> to vector<8x1xf32>
    %106 = vector.broadcast %105 : vector<8x1xf32> to vector<8x128xf32>
    %107 = arith.mulf %22, %106 : vector<8x128xf32>
    %108 = arith.addf %104, %107 : vector<8x128xf32>
    %109 = arith.mulf %97, %108 : vector<8x128xf32>
    %cst_40 = arith.constant dense<0.000000e+00> : vector<8x128xf32>
    %110 = tpu.matmul %109, %74, %cst_40 {dimension_numbers = #tpu.dot_dimension_numbers<[1], [0], [0], [1], [0, 0, 1, 1], [], []>} : vector<8x128xf32>, vector<128x128xf32>, vector<8x128xf32> -> vector<8x128xf32>
    %111 = vector.broadcast %76 : vector<1x128xf32> to vector<8x128xf32>
    %112 = arith.addf %110, %111 : vector<8x128xf32>
    %113 = arith.mulf %0, %112 : vector<8x128xf32>
    %114 = arith.addf %113, %68 : vector<8x128xf32>
    %c0_41 = arith.constant 0 : index
    %c0_42 = arith.constant 0 : index
    %115 = vector.load %arg6[%c0_41, %c0_42] : memref<8x128xf32, #tpu.memory_space<vmem>>, vector<8x128xf32>
    tpu.vector_store %arg6[%c0_41, %c0_42], %114 {strides = array<i32>} : memref<8x128xf32, #tpu.memory_space<vmem>>, vector<8x128xf32>,
    return
  }
  func.func @transform_0(%arg0: i32) -> (i32, i32) {
    %c0_i32 = arith.constant 0 : i32
    %c0_i32_0 = arith.constant 0 : i32
    return %arg0, %c0_i32 : i32, i32
  }
  func.func @transform_1(%arg0: i32) -> (i32, i32, i32) {
    %c0_i32 = arith.constant 0 : i32
    %c0_i32_0 = arith.constant 0 : i32
    %c0_i32_1 = arith.constant 0 : i32
    %c0_i32_2 = arith.constant 0 : i32
    return %c0_i32, %c0_i32_0, %c0_i32_1 : i32, i32, i32
  }
  func.func @transform_2(%arg0: i32) -> (i32, i32, i32) {
    %c0_i32 = arith.constant 0 : i32
    %c0_i32_0 = arith.constant 0 : i32
    %c0_i32_1 = arith.constant 0 : i32
    %c0_i32_2 = arith.constant 0 : i32
    return %c0_i32, %c0_i32_0, %c0_i32_1 : i32, i32, i32
  }
  func.func @transform_3(%arg0: i32) -> (i32, i32, i32) {
    %c0_i32 = arith.constant 0 : i32
    %c0_i32_0 = arith.constant 0 : i32
    %c0_i32_1 = arith.constant 0 : i32
    %c0_i32_2 = arith.constant 0 : i32
    return %c0_i32, %c0_i32_0, %c0_i32_1 : i32, i32, i32
  }
  func.func @transform_4(%arg0: i32) -> (i32, i32, i32) {
    %c0_i32 = arith.constant 0 : i32
    %c0_i32_0 = arith.constant 0 : i32
    %c0_i32_1 = arith.constant 0 : i32
    %c0_i32_2 = arith.constant 0 : i32
    return %c0_i32, %c0_i32_0, %c0_i32_1 : i32, i32, i32
  }
  func.func @transform_5(%arg0: i32) -> (i32, i32) {
    %c0_i32 = arith.constant 0 : i32
    %c0_i32_0 = arith.constant 0 : i32
    return %arg0, %c0_i32 : i32, i32
  }
}

module attributes {stable_mosaic.version = 11 : i64} {
  func.func @_dcn_fused_kernel(%arg0: i32, %arg1: memref<8x128xf32, #tpu.memory_space<vmem>>, %arg2: memref<2x128x128xf32, #tpu.memory_space<vmem>>, %arg3: memref<2x128x128xf32, #tpu.memory_space<vmem>>, %arg4: memref<2x128x128xf32, #tpu.memory_space<vmem>>, %arg5: memref<2x1x128xf32, #tpu.memory_space<vmem>>, %arg6: memref<8x128xf32, #tpu.memory_space<vmem>>) attributes {dimension_semantics = [#tpu.dimension_semantics<parallel>], iteration_bounds = array<i64: 2>, scalar_prefetch = 0 : i64, scratch_operands = 0 : i64, tpu.core_type = #tpu.core_type<tc>, window_params = [{transform_indices = @transform_0, window_bounds = array<i64: 8, 128>}, {pipeline_mode = #tpu.pipeline_mode<synchronous>, transform_indices = @transform_1, window_bounds = array<i64: 2, 128, 128>}, {pipeline_mode = #tpu.pipeline_mode<synchronous>, transform_indices = @transform_2, window_bounds = array<i64: 2, 128, 128>}, {pipeline_mode = #tpu.pipeline_mode<synchronous>, transform_indices = @transform_3, window_bounds = array<i64: 2, 128, 128>}, {pipeline_mode = #tpu.pipeline_mode<synchronous>, transform_indices = @transform_4, window_bounds = array<i64: 2, 1, 128>}, {transform_indices = @transform_5, window_bounds = array<i64: 8, 128>}]} {
    %c0 = arith.constant 0 : index
    %c0_0 = arith.constant 0 : index
    %0 = vector.load %arg1[%c0, %c0_0] : memref<8x128xf32, #tpu.memory_space<vmem>>, vector<8x128xf32>
    %1 = tpu.iota {dimensions = array<i32: 1>} : vector<8x128xi32>
    %c0_i32 = arith.constant 0 : i32
    %2 = vector.broadcast %c0_i32 : i32 to vector<8x128xi32>
    %3 = arith.cmpi sge, %1, %2 : vector<8x128xi32>
    %c4_i32 = arith.constant 4 : i32
    %4 = vector.broadcast %c4_i32 : i32 to vector<8x128xi32>
    %5 = arith.cmpi slt, %1, %4 : vector<8x128xi32>
    %6 = arith.andi %3, %5 : vector<8x128xi1>
    %7 = arith.extui %6 : vector<8x128xi1> to vector<8x128xi32>
    %8 = arith.sitofp %7 : vector<8x128xi32> to vector<8x128xf32>
    %c4_i32_1 = arith.constant 4 : i32
    %9 = vector.broadcast %c4_i32_1 : i32 to vector<8x128xi32>
    %10 = arith.cmpi sge, %1, %9 : vector<8x128xi32>
    %c8_i32 = arith.constant 8 : i32
    %11 = vector.broadcast %c8_i32 : i32 to vector<8x128xi32>
    %12 = arith.cmpi slt, %1, %11 : vector<8x128xi32>
    %13 = arith.andi %10, %12 : vector<8x128xi1>
    %14 = arith.extui %13 : vector<8x128xi1> to vector<8x128xi32>
    %15 = arith.sitofp %14 : vector<8x128xi32> to vector<8x128xf32>
    %c8_i32_2 = arith.constant 8 : i32
    %16 = vector.broadcast %c8_i32_2 : i32 to vector<8x128xi32>
    %17 = arith.cmpi sge, %1, %16 : vector<8x128xi32>
    %c12_i32 = arith.constant 12 : i32
    %18 = vector.broadcast %c12_i32 : i32 to vector<8x128xi32>
    %19 = arith.cmpi slt, %1, %18 : vector<8x128xi32>
    %20 = arith.andi %17, %19 : vector<8x128xi1>
    %21 = arith.extui %20 : vector<8x128xi1> to vector<8x128xi32>
    %22 = arith.sitofp %21 : vector<8x128xi32> to vector<8x128xf32>
    %c0_3 = arith.constant 0 : index
    %c0_4 = arith.constant 0 : index
    %c0_5 = arith.constant 0 : index
    %23 = vector.load %arg2[%c0_3, %c0_4, %c0_5] : memref<2x128x128xf32, #tpu.memory_space<vmem>>, vector<1x128x128xf32>
    %24 = vector.shape_cast %23 : vector<1x128x128xf32> to vector<128x128xf32>
    %c0_6 = arith.constant 0 : index
    %c0_7 = arith.constant 0 : index
    %c0_8 = arith.constant 0 : index
    %25 = vector.load %arg3[%c0_6, %c0_7, %c0_8] : memref<2x128x128xf32, #tpu.memory_space<vmem>>, vector<1x128x128xf32>
    %26 = vector.shape_cast %25 : vector<1x128x128xf32> to vector<128x128xf32>
    %c0_9 = arith.constant 0 : index
    %c0_10 = arith.constant 0 : index
    %c0_11 = arith.constant 0 : index
    %27 = vector.load %arg4[%c0_9, %c0_10, %c0_11] : memref<2x128x128xf32, #tpu.memory_space<vmem>>, vector<1x128x128xf32>
    %28 = vector.shape_cast %27 : vector<1x128x128xf32> to vector<128x128xf32>
    %c0_12 = arith.constant 0 : index
    %c0_13 = arith.constant 0 : index
    %c0_14 = arith.constant 0 : index
    %29 = vector.load %arg5[%c0_12, %c0_13, %c0_14] : memref<2x1x128xf32, #tpu.memory_space<vmem>>, vector<1x1x128xf32>
    %30 = vector.shape_cast %29 : vector<1x1x128xf32> to vector<1x128xf32>
    %cst = arith.constant dense<0.000000e+00> : vector<8x128xf32>
    %31 = tpu.matmul %0, %24, %cst {dimension_numbers = #tpu.dot_dimension_numbers<[1], [1], [0], [0], [0, 0, 1, 0], [], []>} : vector<8x128xf32>, vector<128x128xf32>, vector<8x128xf32> -> vector<8x128xf32>
    %32 = vector.extract_strided_slice %31 {offsets = [0, 12], sizes = [8, 3], strides = [1, 1]} : vector<8x128xf32> to vector<8x3xf32>
    %cst_15 = arith.constant dense<0xFF800000> : vector<8xf32>
    %33 = vector.multi_reduction <maximumf>, %32, %cst_15 [1] : vector<8x3xf32> to vector<8xf32>
    %34 = vector.shape_cast %33 : vector<8xf32> to vector<8x1xf32>
    %35 = vector.broadcast %34 : vector<8x1xf32> to vector<8x3xf32>
    %36 = arith.subf %32, %35 : vector<8x3xf32>
    %37 = math.exp %36 : vector<8x3xf32>
    %cst_16 = arith.constant dense<0.000000e+00> : vector<8xf32>
    %38 = vector.multi_reduction <add>, %37, %cst_16 [1] : vector<8x3xf32> to vector<8xf32>
    %39 = vector.shape_cast %38 : vector<8xf32> to vector<8x1xf32>
    %40 = tpu.reciprocal %39 {approx = true} : vector<8x1xf32> -> vector<8x1xf32>
    %41 = arith.mulf %39, %40 : vector<8x1xf32>
    %cst_17 = arith.constant 2.000000e+00 : f32
    %42 = vector.broadcast %cst_17 : f32 to vector<8x1xf32>
    %43 = arith.subf %42, %41 : vector<8x1xf32>
    %44 = arith.mulf %40, %43 : vector<8x1xf32>
    %45 = vector.broadcast %44 : vector<8x1xf32> to vector<8x3xf32>
    %46 = arith.mulf %37, %45 : vector<8x3xf32>
    %cst_18 = arith.constant 0.000000e+00 : f32
    %47 = vector.broadcast %cst_18 : f32 to vector<8x128xf32>
    %48 = arith.maximumf %31, %47 : vector<8x128xf32>
    %cst_19 = arith.constant dense<0.000000e+00> : vector<8x128xf32>
    %49 = tpu.matmul %48, %26, %cst_19 {dimension_numbers = #tpu.dot_dimension_numbers<[1], [1], [0], [0], [0, 0, 1, 0], [], []>} : vector<8x128xf32>, vector<128x128xf32>, vector<8x128xf32> -> vector<8x128xf32>
    %cst_20 = arith.constant 0.000000e+00 : f32
    %50 = vector.broadcast %cst_20 : f32 to vector<8x128xf32>
    %51 = arith.maximumf %49, %50 : vector<8x128xf32>
    %52 = vector.extract_strided_slice %46 {offsets = [0, 0], sizes = [8, 1], strides = [1, 1]} : vector<8x3xf32> to vector<8x1xf32>
    %53 = vector.broadcast %52 : vector<8x1xf32> to vector<8x128xf32>
    %54 = arith.mulf %8, %53 : vector<8x128xf32>
    %55 = vector.extract_strided_slice %46 {offsets = [0, 1], sizes = [8, 1], strides = [1, 1]} : vector<8x3xf32> to vector<8x1xf32>
    %56 = vector.broadcast %55 : vector<8x1xf32> to vector<8x128xf32>
    %57 = arith.mulf %15, %56 : vector<8x128xf32>
    %58 = arith.addf %54, %57 : vector<8x128xf32>
    %59 = vector.extract_strided_slice %46 {offsets = [0, 2], sizes = [8, 1], strides = [1, 1]} : vector<8x3xf32> to vector<8x1xf32>
    %60 = vector.broadcast %59 : vector<8x1xf32> to vector<8x128xf32>
    %61 = arith.mulf %22, %60 : vector<8x128xf32>
    %62 = arith.addf %58, %61 : vector<8x128xf32>
    %63 = arith.mulf %51, %62 : vector<8x128xf32>
    %cst_21 = arith.constant dense<0.000000e+00> : vector<8x128xf32>
    %64 = tpu.matmul %63, %28, %cst_21 {dimension_numbers = #tpu.dot_dimension_numbers<[1], [0], [0], [1], [0, 0, 1, 1], [], []>} : vector<8x128xf32>, vector<128x128xf32>, vector<8x128xf32> -> vector<8x128xf32>
    %65 = vector.broadcast %30 : vector<1x128xf32> to vector<8x128xf32>
    %66 = arith.addf %64, %65 : vector<8x128xf32>
    %67 = arith.mulf %0, %66 : vector<8x128xf32>
    %68 = arith.addf %67, %0 : vector<8x128xf32>
    %c1 = arith.constant 1 : index
    %c0_22 = arith.constant 0 : index
    %c0_23 = arith.constant 0 : index
    %69 = vector.load %arg2[%c1, %c0_22, %c0_23] : memref<2x128x128xf32, #tpu.memory_space<vmem>>, vector<1x128x128xf32>
    %70 = vector.shape_cast %69 : vector<1x128x128xf32> to vector<128x128xf32>
    %c1_24 = arith.constant 1 : index
    %c0_25 = arith.constant 0 : index
    %c0_26 = arith.constant 0 : index
    %71 = vector.load %arg3[%c1_24, %c0_25, %c0_26] : memref<2x128x128xf32, #tpu.memory_space<vmem>>, vector<1x128x128xf32>
    %72 = vector.shape_cast %71 : vector<1x128x128xf32> to vector<128x128xf32>
    %c1_27 = arith.constant 1 : index
    %c0_28 = arith.constant 0 : index
    %c0_29 = arith.constant 0 : index
    %73 = vector.load %arg4[%c1_27, %c0_28, %c0_29] : memref<2x128x128xf32, #tpu.memory_space<vmem>>, vector<1x128x128xf32>
    %74 = vector.shape_cast %73 : vector<1x128x128xf32> to vector<128x128xf32>
    %c1_30 = arith.constant 1 : index
    %c0_31 = arith.constant 0 : index
    %c0_32 = arith.constant 0 : index
    %75 = vector.load %arg5[%c1_30, %c0_31, %c0_32] : memref<2x1x128xf32, #tpu.memory_space<vmem>>, vector<1x1x128xf32>
    %76 = vector.shape_cast %75 : vector<1x1x128xf32> to vector<1x128xf32>
    %cst_33 = arith.constant dense<0.000000e+00> : vector<8x128xf32>
    %77 = tpu.matmul %68, %70, %cst_33 {dimension_numbers = #tpu.dot_dimension_numbers<[1], [1], [0], [0], [0, 0, 1, 0], [], []>} : vector<8x128xf32>, vector<128x128xf32>, vector<8x128xf32> -> vector<8x128xf32>
    %78 = vector.extract_strided_slice %77 {offsets = [0, 12], sizes = [8, 3], strides = [1, 1]} : vector<8x128xf32> to vector<8x3xf32>
    %cst_34 = arith.constant dense<0xFF800000> : vector<8xf32>
    %79 = vector.multi_reduction <maximumf>, %78, %cst_34 [1] : vector<8x3xf32> to vector<8xf32>
    %80 = vector.shape_cast %79 : vector<8xf32> to vector<8x1xf32>
    %81 = vector.broadcast %80 : vector<8x1xf32> to vector<8x3xf32>
    %82 = arith.subf %78, %81 : vector<8x3xf32>
    %83 = math.exp %82 : vector<8x3xf32>
    %cst_35 = arith.constant dense<0.000000e+00> : vector<8xf32>
    %84 = vector.multi_reduction <add>, %83, %cst_35 [1] : vector<8x3xf32> to vector<8xf32>
    %85 = vector.shape_cast %84 : vector<8xf32> to vector<8x1xf32>
    %86 = tpu.reciprocal %85 {approx = true} : vector<8x1xf32> -> vector<8x1xf32>
    %87 = arith.mulf %85, %86 : vector<8x1xf32>
    %cst_36 = arith.constant 2.000000e+00 : f32
    %88 = vector.broadcast %cst_36 : f32 to vector<8x1xf32>
    %89 = arith.subf %88, %87 : vector<8x1xf32>
    %90 = arith.mulf %86, %89 : vector<8x1xf32>
    %91 = vector.broadcast %90 : vector<8x1xf32> to vector<8x3xf32>
    %92 = arith.mulf %83, %91 : vector<8x3xf32>
    %cst_37 = arith.constant 0.000000e+00 : f32
    %93 = vector.broadcast %cst_37 : f32 to vector<8x128xf32>
    %94 = arith.maximumf %77, %93 : vector<8x128xf32>
    %cst_38 = arith.constant dense<0.000000e+00> : vector<8x128xf32>
    %95 = tpu.matmul %94, %72, %cst_38 {dimension_numbers = #tpu.dot_dimension_numbers<[1], [1], [0], [0], [0, 0, 1, 0], [], []>} : vector<8x128xf32>, vector<128x128xf32>, vector<8x128xf32> -> vector<8x128xf32>
    %cst_39 = arith.constant 0.000000e+00 : f32
    %96 = vector.broadcast %cst_39 : f32 to vector<8x128xf32>
    %97 = arith.maximumf %95, %96 : vector<8x128xf32>
    %98 = vector.extract_strided_slice %92 {offsets = [0, 0], sizes = [8, 1], strides = [1, 1]} : vector<8x3xf32> to vector<8x1xf32>
    %99 = vector.broadcast %98 : vector<8x1xf32> to vector<8x128xf32>
    %100 = arith.mulf %8, %99 : vector<8x128xf32>
    %101 = vector.extract_strided_slice %92 {offsets = [0, 1], sizes = [8, 1], strides = [1, 1]} : vector<8x3xf32> to vector<8x1xf32>
    %102 = vector.broadcast %101 : vector<8x1xf32> to vector<8x128xf32>
    %103 = arith.mulf %15, %102 : vector<8x128xf32>
    %104 = arith.addf %100, %103 : vector<8x128xf32>
    %105 = vector.extract_strided_slice %92 {offsets = [0, 2], sizes = [8, 1], strides = [1, 1]} : vector<8x3xf32> to vector<8x1xf32>
    %106 = vector.broadcast %105 : vector<8x1xf32> to vector<8x128xf32>
    %107 = arith.mulf %22, %106 : vector<8x128xf32>
    %108 = arith.addf %104, %107 : vector<8x128xf32>
    %109 = arith.mulf %97, %108 : vector<8x128xf32>
    %cst_40 = arith.constant dense<0.000000e+00> : vector<8x128xf32>
    %110 = tpu.matmul %109, %74, %cst_40 {dimension_numbers = #tpu.dot_dimension_numbers<[1], [0], [0], [1], [0, 0, 1, 1], [], []>} : vector<8x128xf32>, vector<128x128xf32>, vector<8x128xf32> -> vector<8x128xf32>
    %111 = vector.broadcast %76 : vector<1x128xf32> to vector<8x128xf32>
    %112 = arith.addf %110, %111 : vector<8x128xf32>
    %113 = arith.mulf %0, %112 : vector<8x128xf32>
    %114 = arith.addf %113, %68 : vector<8x128xf32>
    %c0_41 = arith.constant 0 : index
    %c0_42 = arith.constant 0 : index
    %115 = vector.load %arg6[%c0_41, %c0_42] : memref<8x128xf32, #tpu.memory_space<vmem>>, vector<8x128xf32>
    tpu.vector_store %arg6[%c0_41, %c0_42], %114 {strides = array<i32>} : memref<8x128xf32, #tpu.memory_space<vmem>>, vector<8x128xf32>,
    return
  }
  func.func @transform_0(%arg0: i32) -> (i32, i32) {
    %c0_i32 = arith.constant 0 : i32
    %c0_i32_0 = arith.constant 0 : i32
    return %arg0, %c0_i32 : i32, i32
  }
  func.func @transform_1(%arg0: i32) -> (i32, i32, i32) {
    %c0_i32 = arith.constant 0 : i32
    %c0_i32_0 = arith.constant 0 : i32
    %c0_i32_1 = arith.constant 0 : i32
    %c0_i32_2 = arith.constant 0 : i32
    return %c0_i32, %c0_i32_0, %c0_i32_1 : i32, i32, i32
  }
  func.func @transform_2(%arg0: i32) -> (i32, i32, i32) {
    %c0_i32 = arith.constant 0 : i32
    %c0_i32_0 = arith.constant 0 : i32
    %c0_i32_1 = arith.constant 0 : i32
    %c0_i32_2 = arith.constant 0 : i32
    return %c0_i32, %c0_i32_0, %c0_i32_1 : i32, i32, i32
  }
  func.func @transform_3(%arg0: i32) -> (i32, i32, i32) {
    %c0_i32 = arith.constant 0 : i32
    %c0_i32_0 = arith.constant 0 : i32
    %c0_i32_1 = arith.constant 0 : i32
    %c0_i32_2 = arith.constant 0 : i32
    return %c0_i32, %c0_i32_0, %c0_i32_1 : i32, i32, i32
  }
  func.func @transform_4(%arg0: i32) -> (i32, i32, i32) {
    %c0_i32 = arith.constant 0 : i32
    %c0_i32_0 = arith.constant 0 : i32
    %c0_i32_1 = arith.constant 0 : i32
    %c0_i32_2 = arith.constant 0 : i32
    return %c0_i32, %c0_i32_0, %c0_i32_1 : i32, i32, i32
  }
  func.func @transform_5(%arg0: i32) -> (i32, i32) {
    %c0_i32 = arith.constant 0 : i32
    %c0_i32_0 = arith.constant 0 : i32
    return %arg0, %c0_i32 : i32, i32
  }
}

</mosaic_0001>

<llo_original>
// kernel: tpu_custom_call.1
$region0: #{tpu_custom_call.1}
  #allocation0 [shape = 'u32[]', space=smem, size = 0x4, offset = 0x4, fixed_abs, tag = 'smem constant byte address 0x4 - core index']
  #allocation1 [shape = 'u32[144,128]{1,0:T(1,128)}', space=vmem, size = 0x12000, scoped, tag = 'internal scratch']
  %s0 = inlined_call_operand.hbm [shape: f32[16,128], index: 0, kind: input, shape index: {}]
  %s1 = inlined_call_operand.hbm [shape: f32[2,128,128], index: 1, kind: input, shape index: {}]
  %s2 = inlined_call_operand.hbm [shape: f32[2,128,128], index: 2, kind: input, shape index: {}]
  %s3 = inlined_call_operand.hbm [shape: f32[2,128,128], index: 3, kind: input, shape index: {}]
  %s4 = inlined_call_operand.vmem [shape: f32[2,1,128], index: 4, kind: input, shape index: {}]
  %s5 = inlined_call_operand.hbm [shape: f32[16,128], index: 5, kind: output, shape index: {}]
  %s6 = sld [smem:[#allocation0]]
  $region69: #{tpu_custom_call.1} parent=0
    _
  %s8 = ssub.s32 1, %s6
  %s9 = scalar_select 0, %s8, %s6
  $region1: #{tpu_custom_call.1} parent=0
    #allocation2 [shape = 'u8[8192]{0}', space=vmem, size = 0x2000, scoped, tag = 'input window, operand 0']
    #allocation3 [shape = 's32[2]{0}', space=sflag, size = 0x8, scoped, tag = 'scoped memory for tpu_custom_call.1']
    #allocation4 [shape = 's32[2]{0}', space=sflag, size = 0x8, scoped, tag = 'scoped memory for tpu_custom_call.1']
    #allocation5 [shape = 'u8[131072]{0}', space=vmem, size = 0x20000, scoped, tag = 'input window, operand 1, single buffered']
    #allocation6 [shape = 's32[1]{0}', space=sflag, size = 0x4, scoped, tag = 'scoped memory for tpu_custom_call.1']
    #allocation7 [shape = 'u8[131072]{0}', space=vmem, size = 0x20000, scoped, tag = 'input window, operand 2, single buffered']
    #allocation8 [shape = 'u8[131072]{0}', space=vmem, size = 0x20000, scoped, tag = 'input window, operand 3, single buffered']
    #allocation9 [shape = 's32[1]{0}', space=sflag, size = 0x4, scoped, tag = 'scoped memory for tpu_custom_call.1']
    #allocation10 [shape = 'u8[8192]{0}', space=vmem, size = 0x2000, scoped, tag = 'output window, operand 0']
    %10 = vsyncpa [#allocation3], 0
    %s11 = scalar_lea.sflag [#allocation3], 1
    %12 = vsyncpa %s11, 0
    %13 = vsyncpa [#allocation6], 0
    %14 = vsyncpa [#allocation9], 0
    %15 = vsyncpa [#allocation4], 0
    %s16 = scalar_lea.sflag [#allocation4], 1
    %17 = vsyncpa %s16, 0
    loop: start=0, step=1, limit=4
    $region2: #{tpu_custom_call.1} parent=1 // loop_pre_header
      _
    $region3: #{tpu_custom_call.1} parent=1 // loop_header
      %s19 = sphi 0, %s23
      %p20 = scmp.ge.s32.totalorder %s19, 4
      %s29 = sphi 0, %s31
      %s32 = sphi 0, %s29
      %s33 = sphi 0, %s32
      %s49 = sphi 0, %s33
      %s53 = sphi 0, %s53
      %s55 = sphi 0, %s53
      %s56 = sphi 0, %s55
      %s70 = sphi 0, %s56
      %s74 = sphi 0, %s74
      %s76 = sphi 0, %s74
      %s77 = sphi 0, %s76
      %s91 = sphi 0, %s77
      %s95 = sphi 0, %s95
      %s97 = sphi 0, %s95
      %s98 = sphi 0, %s97
      %s112 = sphi 0, %s98
      %s116 = sphi 0, %s116
      %s118 = sphi 0, %s116
      %s119 = sphi 0, %s118
      %s133 = sphi 0, %s119
      %s139 = sphi 0, %s141
      %s142 = sphi 0, %s139
      %s143 = sphi 0, %s142
      %s159 = sphi 0, %s143
    $region4: #{tpu_custom_call.1} parent=1 // loop_header_branch
      %22 = sbr.rel (%p20) target = $region8
    $region5: #{tpu_custom_call.1} parent=1 // loop_body
      %s24 = ssub.s32 %s19, 1
      %s25 = ssub.s32 %s19, 2
      %s26 = sadd.s32 %s19, 1
      %s27 = ssub.s32 %s19, %s26
      %p28 = scmp.eq.s32.totalorder %s27, 0
      %s30 = sadd.s32 %s29, 1
      %s31 = scalar_select %p28, %s29, %s30
      %p34 = pneg %p28
      %p35 = scmp.eq.s32.totalorder %s19, 1
      %p36 = por %p34, %p35
      %p37 = scmp.ne.s32.totalorder %s29, %s32
      %p38 = scmp.eq.s32.totalorder %s19, 0
      %p39 = por %p37, %p38
      %p40 = scmp.ne.s32.totalorder %s29, %s32
      %p41 = scmp.eq.s32.totalorder %s24, 1
      %p42 = por %p40, %p41
      %p43 = scmp.ne.s32.totalorder %s32, %s33
      %p44 = scmp.eq.s32.totalorder %s24, 0
      %p45 = por %p43, %p44
      %p46 = scmp.ne.s32.totalorder %s32, %s33
      %p47 = scmp.eq.s32.totalorder %s25, 1
      %p48 = por %p46, %p47
      %p50 = scmp.ne.s32.totalorder %s33, %s49
      %p51 = scmp.eq.s32.totalorder %s25, 0
      %p52 = por %p50, %p51
      %s54 = sadd.s32 %s53, 1
      %p57 = scmp.eq.s32.totalorder %s19, 1
      %p58 = scmp.ne.s32.totalorder %s53, %s55
      %p59 = scmp.eq.s32.totalorder %s19, 0
      %p60 = por %p58, %p59
      %p61 = scmp.ne.s32.totalorder %s53, %s55
      %p62 = scmp.eq.s32.totalorder %s24, 1
      %p63 = por %p61, %p62
      %p64 = scmp.ne.s32.totalorder %s55, %s56
      %p65 = scmp.eq.s32.totalorder %s24, 0
      %p66 = por %p64, %p65
      %p67 = scmp.ne.s32.totalorder %s55, %s56
      %p68 = scmp.eq.s32.totalorder %s25, 1
      %p69 = por %p67, %p68
      %p71 = scmp.ne.s32.totalorder %s56, %s70
      %p72 = scmp.eq.s32.totalorder %s25, 0
      %p73 = por %p71, %p72
      %s75 = sadd.s32 %s74, 1
      %p78 = scmp.eq.s32.totalorder %s19, 1
      %p79 = scmp.ne.s32.totalorder %s74, %s76
      %p80 = scmp.eq.s32.totalorder %s19, 0
      %p81 = por %p79, %p80
      %p82 = scmp.ne.s32.totalorder %s74, %s76
      %p83 = scmp.eq.s32.totalorder %s24, 1
      %p84 = por %p82, %p83
      %p85 = scmp.ne.s32.totalorder %s76, %s77
      %p86 = scmp.eq.s32.totalorder %s24, 0
      %p87 = por %p85, %p86
      %p88 = scmp.ne.s32.totalorder %s76, %s77
      %p89 = scmp.eq.s32.totalorder %s25, 1
      %p90 = por %p88, %p89
      %p92 = scmp.ne.s32.totalorder %s77, %s91
      %p93 = scmp.eq.s32.totalorder %s25, 0
      %p94 = por %p92, %p93
      %s96 = sadd.s32 %s95, 1
      %p99 = scmp.eq.s32.totalorder %s19, 1
      %p100 = scmp.ne.s32.totalorder %s95, %s97
      %p101 = scmp.eq.s32.totalorder %s19, 0
      %p102 = por %p100, %p101
      %p103 = scmp.ne.s32.totalorder %s95, %s97
      %p104 = scmp.eq.s32.totalorder %s24, 1
      %p105 = por %p103, %p104
      %p106 = scmp.ne.s32.totalorder %s97, %s98
      %p107 = scmp.eq.s32.totalorder %s24, 0
      %p108 = por %p106, %p107
      %p109 = scmp.ne.s32.totalorder %s97, %s98
      %p110 = scmp.eq.s32.totalorder %s25, 1
      %p111 = por %p109, %p110
      %p113 = scmp.ne.s32.totalorder %s98, %s112
      %p114 = scmp.eq.s32.totalorder %s25, 0
      %p115 = por %p113, %p114
      %s117 = sadd.s32 %s116, 1
      %p120 = scmp.eq.s32.totalorder %s19, 1
      %p121 = scmp.ne.s32.totalorder %s116, %s118
      %p122 = scmp.eq.s32.totalorder %s19, 0
      %p123 = por %p121, %p122
      %p124 = scmp.ne.s32.totalorder %s116, %s118
      %p125 = scmp.eq.s32.totalorder %s24, 1
      %p126 = por %p124, %p125
      %p127 = scmp.ne.s32.totalorder %s118, %s119
      %p128 = scmp.eq.s32.totalorder %s24, 0
      %p129 = por %p127, %p128
      %p130 = scmp.ne.s32.totalorder %s118, %s119
      %p131 = scmp.eq.s32.totalorder %s25, 1
      %p132 = por %p130, %p131
      %p134 = scmp.ne.s32.totalorder %s119, %s133
      %p135 = scmp.eq.s32.totalorder %s25, 0
      %p136 = por %p134, %p135
      %s137 = ssub.s32 %s19, %s26
      %p138 = scmp.eq.s32.totalorder %s137, 0
      %s140 = sadd.s32 %s139, 1
      %s141 = scalar_select %p138, %s139, %s140
      %p144 = pneg %p138
      %p145 = scmp.eq.s32.totalorder %s19, 1
      %p146 = por %p144, %p145
      %p147 = scmp.ne.s32.totalorder %s139, %s142
      %p148 = scmp.eq.s32.totalorder %s19, 0
      %p149 = por %p147, %p148
      %p150 = scmp.ne.s32.totalorder %s139, %s142
      %p151 = scmp.eq.s32.totalorder %s24, 1
      %p152 = por %p150, %p151
      %p153 = scmp.ne.s32.totalorder %s142, %s143
      %p154 = scmp.eq.s32.totalorder %s24, 0
      %p155 = por %p153, %p154
      %p156 = scmp.ne.s32.totalorder %s142, %s143
      %p157 = scmp.eq.s32.totalorder %s25, 1
      %p158 = por %p156, %p157
      %p160 = scmp.ne.s32.totalorder %s143, %s159
      %p161 = scmp.eq.s32.totalorder %s25, 0
      %p162 = por %p160, %p161
      %p163 = scmp.le.s32.totalorder 1, %s19
      %p164 = scmp.lt.s32.totalorder %s19, 3
      %p165 = pnand %p163, %p164
      %p166 = pneg %p165
      // Predicated region
      $region9: #{tpu_custom_call.1} parent=5 // pred_check
        _
      $region10: #{tpu_custom_call.1} parent=5 // pred_check_branch
        %168 = sbr.rel (%p165) target = $region12
      $region11: #{tpu_custom_call.1} parent=5 // pred_region
        %s169 = ssub.s32 %s19, 1
        // Predicated region
        $region13: #{tpu_custom_call.1} parent=11 // pred_check
          %p170 = pneg %p66
        $region14: #{tpu_custom_call.1} parent=11 // pred_check_branch
          %172 = sbr.rel (%p170) target = $region16
        $region15: #{tpu_custom_call.1} parent=11 // pred_region
          %s174 = ssub.s32 4096, 4096
          %175 = vsyncadd [#allocation6], %s174
          %s176 = sshll.u32 [#allocation5], 4
          %s177 = int_to_ptr.vmem [resolvable:$true] %s176
          %182 = dma.hbm_to_vmem [thread:$0]  %s1, 4096, %s177, [#allocation6], 128, 128, 8
        $region16: #{tpu_custom_call.1} parent=11 // pred_fallthru
          _
        // Predicated region
        $region17: #{tpu_custom_call.1} parent=11 // pred_check
          %p183 = pneg %p87
        $region18: #{tpu_custom_call.1} parent=11 // pred_check_branch
          %185 = sbr.rel (%p183) target = $region20
        $region19: #{tpu_custom_call.1} parent=11 // pred_region
          %s187 = ssub.s32 4096, 4096
          %188 = vsyncadd [#allocation6], %s187
          %s189 = sshll.u32 [#allocation7], 4
          %s190 = int_to_ptr.vmem [resolvable:$true] %s189
          %195 = dma.hbm_to_vmem [thread:$0]  %s2, 4096, %s190, [#allocation6], 128, 128, 8
        $region20: #{tpu_custom_call.1} parent=11 // pred_fallthru
          _
        // Predicated region
        $region21: #{tpu_custom_call.1} parent=11 // pred_check
          %p196 = pneg %p108
        $region22: #{tpu_custom_call.1} parent=11 // pred_check_branch
          %198 = sbr.rel (%p196) target = $region24
        $region23: #{tpu_custom_call.1} parent=11 // pred_region
          %s200 = ssub.s32 4096, 4096
          %201 = vsyncadd [#allocation9], %s200
          %s202 = sshll.u32 [#allocation8], 4
          %s203 = int_to_ptr.vmem [resolvable:$true] %s202
          %208 = dma.hbm_to_vmem [thread:$0]  %s3, 4096, %s203, [#allocation9], 128, 128, 8
        $region24: #{tpu_custom_call.1} parent=11 // pred_fallthru
          _
        // Predicated region
        $region25: #{tpu_custom_call.1} parent=11 // pred_check
          %p209 = pneg %p129
        $region26: #{tpu_custom_call.1} parent=11 // pred_check_branch
          %211 = sbr.rel (%p209) target = $region28
        $region27: #{tpu_custom_call.1} parent=11 // pred_region
          _
        $region28: #{tpu_custom_call.1} parent=11 // pred_fallthru
          _
      $region12: #{tpu_custom_call.1} parent=5 // pred_fallthru
        _
      %p212 = scmp.lt.s32.totalorder %s19, 2
      // Predicated region
      $region29: #{tpu_custom_call.1} parent=5 // pred_check
        %p213 = pneg %p212
      $region30: #{tpu_custom_call.1} parent=5 // pred_check_branch
        %215 = sbr.rel (%p213) target = $region32
      $region31: #{tpu_custom_call.1} parent=5 // pred_region
        // Predicated region
        $region33: #{tpu_custom_call.1} parent=31 // pred_check
          %p216 = pneg %p39
        $region34: #{tpu_custom_call.1} parent=31 // pred_check_branch
          %218 = sbr.rel (%p216) target = $region36
        $region35: #{tpu_custom_call.1} parent=31 // pred_region
          %s219 = sand.u32 %s29, 1
          %s220 = scalar_lea.sflag [#allocation3], %s219
          %s221 = sand.u32 %s29, 1
          %s222 = smul.addr %s221, 8
          %s223 = scalar_lea.vmem [#allocation2], %s222
          %s225 = ssub.s32 128, 128
          %226 = vsyncadd %s220, %s225
          %s227 = smul.addr %s19, 128
          %s228 = scalar_lea.hbm %s0, %s227
          %s230 = sshll.u32 %s223, 4
          %s231 = int_to_ptr.vmem [resolvable:$true] %s230
          %233 = dma.hbm_to_vmem [thread:$0]  %s228, 128, %s231, %s220
        $region36: #{tpu_custom_call.1} parent=31 // pred_fallthru
          _
      $region32: #{tpu_custom_call.1} parent=5 // pred_fallthru
        _
      %p234 = scmp.le.s32.totalorder 1, %s19
      %p235 = scmp.lt.s32.totalorder %s19, 3
      %p236 = pnand %p234, %p235
      %p237 = pneg %p236
      // Predicated region
      $region37: #{tpu_custom_call.1} parent=5 // pred_check
        _
      $region38: #{tpu_custom_call.1} parent=5 // pred_check_branch
        %239 = sbr.rel (%p236) target = $region40
      $region39: #{tpu_custom_call.1} parent=5 // pred_region
        %s240 = ssub.s32 %s19, 1
        %s241 = sand.u32 %s32, 1
        %s242 = scalar_lea.sflag [#allocation3], %s241
        %s243 = sand.u32 %s32, 1
        %s244 = smul.addr %s243, 8
        %s245 = scalar_lea.vmem [#allocation2], %s244
        // Predicated region
        $region41: #{tpu_custom_call.1} parent=39 // pred_check
          %p246 = pneg %p45
        $region42: #{tpu_custom_call.1} parent=39 // pred_check_branch
          %248 = sbr.rel (%p246) target = $region44
        $region43: #{tpu_custom_call.1} parent=39 // pred_region
          %249 = dma.done %s242, 128
        $region44: #{tpu_custom_call.1} parent=39 // pred_fallthru
          _
        // Predicated region
        $region45: #{tpu_custom_call.1} parent=39 // pred_check
          %p250 = pneg %p66
        $region46: #{tpu_custom_call.1} parent=39 // pred_check_branch
          %252 = sbr.rel (%p250) target = $region48
        $region47: #{tpu_custom_call.1} parent=39 // pred_region
          %253 = dma.done [#allocation6], 4096
        $region48: #{tpu_custom_call.1} parent=39 // pred_fallthru
          _
        // Predicated region
        $region49: #{tpu_custom_call.1} parent=39 // pred_check
          %p254 = pneg %p87
        $region50: #{tpu_custom_call.1} parent=39 // pred_check_branch
          %256 = sbr.rel (%p254) target = $region52
        $region51: #{tpu_custom_call.1} parent=39 // pred_region
          %257 = dma.done [#allocation6], 4096
        $region52: #{tpu_custom_call.1} parent=39 // pred_fallthru
          _
        // Predicated region
        $region53: #{tpu_custom_call.1} parent=39 // pred_check
          %p258 = pneg %p108
        $region54: #{tpu_custom_call.1} parent=39 // pred_check_branch
          %260 = sbr.rel (%p258) target = $region56
        $region55: #{tpu_custom_call.1} parent=39 // pred_region
          %261 = dma.done [#allocation9], 4096
        $region56: #{tpu_custom_call.1} parent=39 // pred_fallthru
          _
        %s262 = sand.u32 %s32, 1
        %s263 = scalar_lea.sflag [#allocation3], %s262
        %s264 = sand.u32 %s32, 1
        %s265 = smul.addr %s264, 8
        %s266 = scalar_lea.vmem [#allocation2], %s265
        %p267 = pneg %p45
        %p268 = pneg %p42
        %p269 = pneg %p66
        %p270 = pneg %p63
        %p271 = pneg %p87
        %p272 = pneg %p84
        %p273 = pneg %p108
        %p274 = pneg %p105
        %p275 = pneg %p129
        %p276 = pneg %p126
        %p277 = pneg %p155
        %p278 = pneg %p152
        %s279 = sand.u32 %s142, 1
        %s280 = scalar_lea.sflag [#allocation4], %s279
        %s281 = sand.u32 %s142, 1
        %s282 = smul.addr %s281, 8
        %s283 = scalar_lea.vmem [#allocation10], %s282
        %v284 = vld [vmem:[%s245] sm:$0xff]
        %v285 = vlaneseq
        %v286 = vand.u32 %v285, 127
        %vm287 = vcmp.ge.s32.totalorder %v286, 0
        %vm288 = vcmp.lt.s32.totalorder %v286, 4
        %vm289 = vmand %vm287, %vm288
        %v290 = vsel %vm289, 1, 0
        %v291 = vcvt.s32.f32 %v290
        %vm292 = vcmp.ge.s32.totalorder %v286, 4
        %vm293 = vcmp.lt.s32.totalorder %v286, 8
        %vm294 = vmand %vm292, %vm293
        %v295 = vsel %vm294, 1, 0
        %v296 = vcvt.s32.f32 %v295
        %vm297 = vcmp.ge.s32.totalorder %v286, 8
        %vm298 = vcmp.lt.s32.totalorder %v286, 12
        %vm299 = vmand %vm297, %vm298
        %v300 = vsel %vm299, 1, 0
        %v301 = vcvt.s32.f32 %v300
        %v302 = vld [vmem:[#allocation5] sm:$0xff]
        %v303 = vld [vmem:[#allocation5 + $0x8] sm:$0xff]
        %v304 = vld [vmem:[#allocation5 + $0x10] sm:$0xff]
        %v305 = vld [vmem:[#allocation5 + $0x18] sm:$0xff]
        %v306 = vld [vmem:[#allocation5 + $0x20] sm:$0xff]
        %v307 = vld [vmem:[#allocation5 + $0x28] sm:$0xff]
        %v308 = vld [vmem:[#allocation5 + $0x30] sm:$0xff]
        %v309 = vld [vmem:[#allocation5 + $0x38] sm:$0xff]
        %v310 = vld [vmem:[#allocation5 + $0x40] sm:$0xff]
        %v311 = vld [vmem:[#allocation5 + $0x48] sm:$0xff]
        %v312 = vld [vmem:[#allocation5 + $0x50] sm:$0xff]
        %v313 = vld [vmem:[#allocation5 + $0x58] sm:$0xff]
        %v314 = vld [vmem:[#allocation5 + $0x60] sm:$0xff]
        %v315 = vld [vmem:[#allocation5 + $0x68] sm:$0xff]
        %v316 = vld [vmem:[#allocation5 + $0x70] sm:$0xff]
        %v317 = vld [vmem:[#allocation5 + $0x78] sm:$0xff]
        %v318 = vld [vmem:[#allocation7] sm:$0xff]
        %v319 = vld [vmem:[#allocation7 + $0x8] sm:$0xff]
        %v320 = vld [vmem:[#allocation7 + $0x10] sm:$0xff]
        %v321 = vld [vmem:[#allocation7 + $0x18] sm:$0xff]
        %v322 = vld [vmem:[#allocation7 + $0x20] sm:$0xff]
        %v323 = vld [vmem:[#allocation7 + $0x28] sm:$0xff]
        %v324 = vld [vmem:[#allocation7 + $0x30] sm:$0xff]
        %v325 = vld [vmem:[#allocation7 + $0x38] sm:$0xff]
        %v326 = vld [vmem:[#allocation7 + $0x40] sm:$0xff]
        %v327 = vld [vmem:[#allocation7 + $0x48] sm:$0xff]
        %v328 = vld [vmem:[#allocation7 + $0x50] sm:$0xff]
        %v329 = vld [vmem:[#allocation7 + $0x58] sm:$0xff]
        %v330 = vld [vmem:[#allocation7 + $0x60] sm:$0xff]
        %v331 = vld [vmem:[#allocation7 + $0x68] sm:$0xff]
        %v332 = vld [vmem:[#allocation7 + $0x70] sm:$0xff]
        %v333 = vld [vmem:[#allocation7 + $0x78] sm:$0xff]
        %v334 = vld [vmem:[#allocation8] sm:$0xff]
        %v335 = vld [vmem:[#allocation8 + $0x8] sm:$0xff]
        %v336 = vld [vmem:[#allocation8 + $0x10] sm:$0xff]
        %v337 = vld [vmem:[#allocation8 + $0x18] sm:$0xff]
        %v338 = vld [vmem:[#allocation8 + $0x20] sm:$0xff]
        %v339 = vld [vmem:[#allocation8 + $0x28] sm:$0xff]
        %v340 = vld [vmem:[#allocation8 + $0x30] sm:$0xff]
        %v341 = vld [vmem:[#allocation8 + $0x38] sm:$0xff]
        %v342 = vld [vmem:[#allocation8 + $0x40] sm:$0xff]
        %v343 = vld [vmem:[#allocation8 + $0x48] sm:$0xff]
        %v344 = vld [vmem:[#allocation8 + $0x50] sm:$0xff]
        %v345 = vld [vmem:[#allocation8 + $0x58] sm:$0xff]
        %v346 = vld [vmem:[#allocation8 + $0x60] sm:$0xff]
        %v347 = vld [vmem:[#allocation8 + $0x68] sm:$0xff]
        %v348 = vld [vmem:[#allocation8 + $0x70] sm:$0xff]
        %v349 = vld [vmem:[#allocation8 + $0x78] sm:$0xff]
        %v350 = vld [vmem:[%s4] sm:$0x1]
        %351 = vmatprep.subr.mxu0 0.0
        %352 = vmatpush1.xpose.msra.mxu0 %v317
        %353 = vmatprep.subr.mxu0 0.0
        %354 = vmatpush1.xpose.msra.mxu0 %v316
        %355 = vmatprep.subr.mxu0 0.0
        %356 = vmatpush1.xpose.msra.mxu0 %v315
        %357 = vmatprep.subr.mxu0 0.0
        %358 = vmatpush1.xpose.msra.mxu0 %v314
        %359 = vmatprep.subr.mxu0 0.0
        %360 = vmatpush1.xpose.msra.mxu0 %v313
        %361 = vmatprep.subr.mxu0 0.0
        %362 = vmatpush1.xpose.msra.mxu0 %v312
        %363 = vmatprep.subr.mxu0 0.0
        %364 = vmatpush1.xpose.msra.mxu0 %v311
        %365 = vmatprep.subr.mxu0 0.0
        %366 = vmatpush1.xpose.msra.mxu0 %v310
        %367 = vmatprep.subr.mxu0 0.0
        %368 = vmatpush1.xpose.msra.mxu0 %v309
        %369 = vmatprep.subr.mxu0 0.0
        %370 = vmatpush1.xpose.msra.mxu0 %v308
        %371 = vmatprep.subr.mxu0 0.0
        %372 = vmatpush1.xpose.msra.mxu0 %v307
        %373 = vmatprep.subr.mxu0 0.0
        %374 = vmatpush1.xpose.msra.mxu0 %v306
        %375 = vmatprep.subr.mxu0 0.0
        %376 = vmatpush1.xpose.msra.mxu0 %v305
        %377 = vmatprep.subr.mxu0 0.0
        %378 = vmatpush1.xpose.msra.mxu0 %v304
        %379 = vmatprep.subr.mxu0 0.0
        %380 = vmatpush1.xpose.msra.mxu0 %v303
        %381 = vmatprep.subr.mxu0 0.0
        %382 = vmatpush1.xpose.msra.mxu0 %v302
        %383 = vmatprep.subr.mxu0 0.0
        %384 = vmatpush2.xpose.msra.mxu0 0.0
        %385 = vmatprep.subr.mxu0 0.0
        %386 = vmatpush2.xpose.msra.mxu0 0.0
        %387 = vmatprep.subr.mxu0 0.0
        %388 = vmatpush2.xpose.msra.mxu0 0.0
        %389 = vmatprep.subr.mxu0 0.0
        %390 = vmatpush2.xpose.msra.mxu0 0.0
        %391 = vmatprep.subr.mxu0 0.0
        %392 = vmatpush2.xpose.msra.mxu0 0.0
        %393 = vmatprep.subr.mxu0 0.0
        %394 = vmatpush2.xpose.msra.mxu0 0.0
        %395 = vmatprep.subr.mxu0 0.0
        %396 = vmatpush2.xpose.msra.mxu0 0.0
        %397 = vmatprep.subr.mxu0 0.0
        %398 = vmatpush2.xpose.msra.mxu0 0.0
        %399 = vmatprep.subr.mxu0 0.0
        %400 = vmatpush2.xpose.msra.mxu0 0.0
        %401 = vmatprep.subr.mxu0 0.0
        %402 = vmatpush2.xpose.msra.mxu0 0.0
        %403 = vmatprep.subr.mxu0 0.0
        %404 = vmatpush2.xpose.msra.mxu0 0.0
        %405 = vmatprep.subr.mxu0 0.0
        %406 = vmatpush2.xpose.msra.mxu0 0.0
        %407 = vmatprep.subr.mxu0 0.0
        %408 = vmatpush2.xpose.msra.mxu0 0.0
        %409 = vmatprep.subr.mxu0 0.0
        %410 = vmatpush2.xpose.msra.mxu0 0.0
        %411 = vmatprep.subr.mxu0 0.0
        %412 = vmatpush2.xpose.msra.mxu0 0.0
        %413 = vmatprep.subr.mxu0 0.0
        %414 = vmatpush2.xpose.msra.mxu0 0.0
        %415 = vmatprep.mubr.f32.mxu0 0.0
        %416 = vmatmul.mubr.f32.gmra.mxu0 %v284
        %v417 = vpop.f32.mrf.mxu0
        %v418 = vadd.f32 0.0, %v417
        %v419 = vpop.f32.mrf.mxu0
        %420 = vdwg.mxu0
        %vm421 = vcmask 121952
        %v422 = vsel %vm421, %v418, -inf
        %423 = vmax.xlane.f32.xlu0 %v422
        %v424 = vpop.xlane.xlu0 %423
        %v425 = vsub.f32 %v418, %v424
        %v426 = vmul.f32 %v425, 1.442695
        %v427 = vpow.pop %v426
        %429 = vrot.lane.b32.xlu0 %v427, 116
        %v430 = vpop.permute.xlu0 %429
        %vm432 = vcmask 23552
        %v433 = vsel %vm432, %v430, 0.0
        %434 = vadd.xlane.f32.xlu0 %v433
        %v435 = vpop.xlane.xlu0 %434
        %v436 = vrcp.pop %v435
        %v437 = vmul.f32 %v435, %v436
        %v438 = vsub.f32 2.0, %v437
        %v439 = vmul.f32 %v436, %v438
        %v440 = vmul.f32 %v427, %v439
        %v441 = vmax.f32 %v418, 0.0
        %442 = vmatprep.subr.mxu0 0.0
        %443 = vmatpush1.xpose.msra.mxu0 %v333
        %444 = vmatprep.subr.mxu0 0.0
        %445 = vmatpush1.xpose.msra.mxu0 %v332
        %446 = vmatprep.subr.mxu0 0.0
        %447 = vmatpush1.xpose.msra.mxu0 %v331
        %448 = vmatprep.subr.mxu0 0.0
        %449 = vmatpush1.xpose.msra.mxu0 %v330
        %450 = vmatprep.subr.mxu0 0.0
        %451 = vmatpush1.xpose.msra.mxu0 %v329
        %452 = vmatprep.subr.mxu0 0.0
        %453 = vmatpush1.xpose.msra.mxu0 %v328
        %454 = vmatprep.subr.mxu0 0.0
        %455 = vmatpush1.xpose.msra.mxu0 %v327
        %456 = vmatprep.subr.mxu0 0.0
        %457 = vmatpush1.xpose.msra.mxu0 %v326
        %458 = vmatprep.subr.mxu0 0.0
        %459 = vmatpush1.xpose.msra.mxu0 %v325
        %460 = vmatprep.subr.mxu0 0.0
        %461 = vmatpush1.xpose.msra.mxu0 %v324
        %462 = vmatprep.subr.mxu0 0.0
        %463 = vmatpush1.xpose.msra.mxu0 %v323
        %464 = vmatprep.subr.mxu0 0.0
        %465 = vmatpush1.xpose.msra.mxu0 %v322
        %466 = vmatprep.subr.mxu0 0.0
        %467 = vmatpush1.xpose.msra.mxu0 %v321
        %468 = vmatprep.subr.mxu0 0.0
        %469 = vmatpush1.xpose.msra.mxu0 %v320
        %470 = vmatprep.subr.mxu0 0.0
        %471 = vmatpush1.xpose.msra.mxu0 %v319
        %472 = vmatprep.subr.mxu0 0.0
        %473 = vmatpush1.xpose.msra.mxu0 %v318
        %474 = vmatprep.subr.mxu0 0.0
        %475 = vmatpush2.xpose.msra.mxu0 0.0
        %476 = vmatprep.subr.mxu0 0.0
        %477 = vmatpush2.xpose.msra.mxu0 0.0
        %478 = vmatprep.subr.mxu0 0.0
        %479 = vmatpush2.xpose.msra.mxu0 0.0
        %480 = vmatprep.subr.mxu0 0.0
        %481 = vmatpush2.xpose.msra.mxu0 0.0
        %482 = vmatprep.subr.mxu0 0.0
        %483 = vmatpush2.xpose.msra.mxu0 0.0
        %484 = vmatprep.subr.mxu0 0.0
        %485 = vmatpush2.xpose.msra.mxu0 0.0
        %486 = vmatprep.subr.mxu0 0.0
        %487 = vmatpush2.xpose.msra.mxu0 0.0
        %488 = vmatprep.subr.mxu0 0.0
        %489 = vmatpush2.xpose.msra.mxu0 0.0
        %490 = vmatprep.subr.mxu0 0.0
        %491 = vmatpush2.xpose.msra.mxu0 0.0
        %492 = vmatprep.subr.mxu0 0.0
        %493 = vmatpush2.xpose.msra.mxu0 0.0
        %494 = vmatprep.subr.mxu0 0.0
        %495 = vmatpush2.xpose.msra.mxu0 0.0
        %496 = vmatprep.subr.mxu0 0.0
        %497 = vmatpush2.xpose.msra.mxu0 0.0
        %498 = vmatprep.subr.mxu0 0.0
        %499 = vmatpush2.xpose.msra.mxu0 0.0
        %500 = vmatprep.subr.mxu0 0.0
        %501 = vmatpush2.xpose.msra.mxu0 0.0
        %502 = vmatprep.subr.mxu0 0.0
        %503 = vmatpush2.xpose.msra.mxu0 0.0
        %504 = vmatprep.subr.mxu0 0.0
        %505 = vmatpush2.xpose.msra.mxu0 0.0
        %506 = vmatprep.mubr.f32.mxu0 0.0
        %507 = vmatmul.mubr.f32.gmra.mxu0 %v441
        %v508 = vpop.f32.mrf.mxu0
        %v509 = vadd.f32 0.0, %v508
        %v510 = vpop.f32.mrf.mxu0
        %511 = vdwg.mxu0
        %v512 = vmax.f32 %v509, 0.0
        %514 = vset.pattern.permute.xlu0 12
        %515 = vperm.xlu0 %514, %v440
        %v516 = vpop.permute.xlu0 %515
        %v518 = vmul.f32 %v291, %v516
        %519 = vset.pattern.permute.xlu0 13
        %520 = vperm.xlu0 %519, %v440
        %v521 = vpop.permute.xlu0 %520
        %v523 = vmul.f32 %v296, %v521
        %v524 = vadd.f32 %v518, %v523
        %525 = vset.pattern.permute.xlu0 14
        %526 = vperm.xlu0 %525, %v440
        %v527 = vpop.permute.xlu0 %526
        %v529 = vmul.f32 %v301, %v527
        %v530 = vadd.f32 %v524, %v529
        %v531 = vmul.f32 %v512, %v530
        %v533 = vlaneseq
        %v534 = vshrl.u32 %v533, 7
        %v535 = vsub.s32 0, %v534
        %v536 = vrot.slane %v350, %v535
        %538 = vmatprep.subr.mxu0 0.0
        %539 = vmatpush1.msra.mxu0 %v349
        %540 = vmatprep.subr.mxu0 0.0
        %541 = vmatpush1.msra.mxu0 %v348
        %542 = vmatprep.subr.mxu0 0.0
        %543 = vmatpush1.msra.mxu0 %v347
        %544 = vmatprep.subr.mxu0 0.0
        %545 = vmatpush1.msra.mxu0 %v346
        %546 = vmatprep.subr.mxu0 0.0
        %547 = vmatpush1.msra.mxu0 %v345
        %548 = vmatprep.subr.mxu0 0.0
        %549 = vmatpush1.msra.mxu0 %v344
        %550 = vmatprep.subr.mxu0 0.0
        %551 = vmatpush1.msra.mxu0 %v343
        %552 = vmatprep.subr.mxu0 0.0
        %553 = vmatpush1.msra.mxu0 %v342
        %554 = vmatprep.subr.mxu0 0.0
        %555 = vmatpush1.msra.mxu0 %v341
        %556 = vmatprep.subr.mxu0 0.0
        %557 = vmatpush1.msra.mxu0 %v340
        %558 = vmatprep.subr.mxu0 0.0
        %559 = vmatpush1.msra.mxu0 %v339
        %560 = vmatprep.subr.mxu0 0.0
        %561 = vmatpush1.msra.mxu0 %v338
        %562 = vmatprep.subr.mxu0 0.0
        %563 = vmatpush1.msra.mxu0 %v337
        %564 = vmatprep.subr.mxu0 0.0
        %565 = vmatpush1.msra.mxu0 %v336
        %566 = vmatprep.subr.mxu0 0.0
        %567 = vmatpush1.msra.mxu0 %v335
        %568 = vmatprep.subr.mxu0 0.0
        %569 = vmatpush1.msra.mxu0 %v334
        %570 = vmatprep.subr.mxu0 0.0
        %571 = vmatpush2.msra.mxu0 0.0
        %572 = vmatprep.subr.mxu0 0.0
        %573 = vmatpush2.msra.mxu0 0.0
        %574 = vmatprep.subr.mxu0 0.0
        %575 = vmatpush2.msra.mxu0 0.0
        %576 = vmatprep.subr.mxu0 0.0
        %577 = vmatpush2.msra.mxu0 0.0
        %578 = vmatprep.subr.mxu0 0.0
        %579 = vmatpush2.msra.mxu0 0.0
        %580 = vmatprep.subr.mxu0 0.0
        %581 = vmatpush2.msra.mxu0 0.0
        %582 = vmatprep.subr.mxu0 0.0
        %583 = vmatpush2.msra.mxu0 0.0
        %584 = vmatprep.subr.mxu0 0.0
        %585 = vmatpush2.msra.mxu0 0.0
        %586 = vmatprep.subr.mxu0 0.0
        %587 = vmatpush2.msra.mxu0 0.0
        %588 = vmatprep.subr.mxu0 0.0
        %589 = vmatpush2.msra.mxu0 0.0
        %590 = vmatprep.subr.mxu0 0.0
        %591 = vmatpush2.msra.mxu0 0.0
        %592 = vmatprep.subr.mxu0 0.0
        %593 = vmatpush2.msra.mxu0 0.0
        %594 = vmatprep.subr.mxu0 0.0
        %595 = vmatpush2.msra.mxu0 0.0
        %596 = vmatprep.subr.mxu0 0.0
        %597 = vmatpush2.msra.mxu0 0.0
        %598 = vmatprep.subr.mxu0 0.0
        %599 = vmatpush2.msra.mxu0 0.0
        %600 = vmatprep.subr.mxu0 0.0
        %601 = vmatpush2.msra.mxu0 0.0
        %602 = vmatprep.mubr.f32.mxu0 0.0
        %603 = vmatmul.mubr.f32.gmra.mxu0 %v531
        %v604 = vpop.f32.mrf.mxu0
        %v605 = vadd.f32 %v536, %v604
        %v606 = vpop.f32.mrf.mxu0
        %607 = vdwg.mxu0
        %v608 = vmul.f32 %v284, %v605
        %v609 = vadd.f32 %v608, %v284
        %s610 = scalar_lea.vmem [#allocation5], 128
        %v611 = vld [vmem:[%s610] sm:$0xff]
        %v612 = vld [vmem:[%s610 + $0x8] sm:$0xff]
        %v613 = vld [vmem:[%s610 + $0x10] sm:$0xff]
        %v614 = vld [vmem:[%s610 + $0x18] sm:$0xff]
        %v615 = vld [vmem:[%s610 + $0x20] sm:$0xff]
        %v616 = vld [vmem:[%s610 + $0x28] sm:$0xff]
        %v617 = vld [vmem:[%s610 + $0x30] sm:$0xff]
        %v618 = vld [vmem:[%s610 + $0x38] sm:$0xff]
        %v619 = vld [vmem:[%s610 + $0x40] sm:$0xff]
        %v620 = vld [vmem:[%s610 + $0x48] sm:$0xff]
        %v621 = vld [vmem:[%s610 + $0x50] sm:$0xff]
        %v622 = vld [vmem:[%s610 + $0x58] sm:$0xff]
        %v623 = vld [vmem:[%s610 + $0x60] sm:$0xff]
        %v624 = vld [vmem:[%s610 + $0x68] sm:$0xff]
        %v625 = vld [vmem:[%s610 + $0x70] sm:$0xff]
        %v626 = vld [vmem:[%s610 + $0x78] sm:$0xff]
        %s627 = scalar_lea.vmem [#allocation7], 128
        %v628 = vld [vmem:[%s627] sm:$0xff]
        %v629 = vld [vmem:[%s627 + $0x8] sm:$0xff]
        %v630 = vld [vmem:[%s627 + $0x10] sm:$0xff]
        %v631 = vld [vmem:[%s627 + $0x18] sm:$0xff]
        %v632 = vld [vmem:[%s627 + $0x20] sm:$0xff]
        %v633 = vld [vmem:[%s627 + $0x28] sm:$0xff]
        %v634 = vld [vmem:[%s627 + $0x30] sm:$0xff]
        %v635 = vld [vmem:[%s627 + $0x38] sm:$0xff]
        %v636 = vld [vmem:[%s627 + $0x40] sm:$0xff]
        %v637 = vld [vmem:[%s627 + $0x48] sm:$0xff]
        %v638 = vld [vmem:[%s627 + $0x50] sm:$0xff]
        %v639 = vld [vmem:[%s627 + $0x58] sm:$0xff]
        %v640 = vld [vmem:[%s627 + $0x60] sm:$0xff]
        %v641 = vld [vmem:[%s627 + $0x68] sm:$0xff]
        %v642 = vld [vmem:[%s627 + $0x70] sm:$0xff]
        %v643 = vld [vmem:[%s627 + $0x78] sm:$0xff]
        %s644 = scalar_lea.vmem [#allocation8], 128
        %v645 = vld [vmem:[%s644] sm:$0xff]
        %v646 = vld [vmem:[%s644 + $0x8] sm:$0xff]
        %v647 = vld [vmem:[%s644 + $0x10] sm:$0xff]
        %v648 = vld [vmem:[%s644 + $0x18] sm:$0xff]
        %v649 = vld [vmem:[%s644 + $0x20] sm:$0xff]
        %v650 = vld [vmem:[%s644 + $0x28] sm:$0xff]
        %v651 = vld [vmem:[%s644 + $0x30] sm:$0xff]
        %v652 = vld [vmem:[%s644 + $0x38] sm:$0xff]
        %v653 = vld [vmem:[%s644 + $0x40] sm:$0xff]
        %v654 = vld [vmem:[%s644 + $0x48] sm:$0xff]
        %v655 = vld [vmem:[%s644 + $0x50] sm:$0xff]
        %v656 = vld [vmem:[%s644 + $0x58] sm:$0xff]
        %v657 = vld [vmem:[%s644 + $0x60] sm:$0xff]
        %v658 = vld [vmem:[%s644 + $0x68] sm:$0xff]
        %v659 = vld [vmem:[%s644 + $0x70] sm:$0xff]
        %v660 = vld [vmem:[%s644 + $0x78] sm:$0xff]
        %s661 = scalar_lea.vmem %s4, 1
        %v662 = vld [vmem:[%s661] sm:$0x1]
        %663 = vmatprep.subr.mxu0 0.0
        %664 = vmatpush1.xpose.msra.mxu0 %v626
        %665 = vmatprep.subr.mxu0 0.0
        %666 = vmatpush1.xpose.msra.mxu0 %v625
        %667 = vmatprep.subr.mxu0 0.0
        %668 = vmatpush1.xpose.msra.mxu0 %v624
        %669 = vmatprep.subr.mxu0 0.0
        %670 = vmatpush1.xpose.msra.mxu0 %v623
        %671 = vmatprep.subr.mxu0 0.0
        %672 = vmatpush1.xpose.msra.mxu0 %v622
        %673 = vmatprep.subr.mxu0 0.0
        %674 = vmatpush1.xpose.msra.mxu0 %v621
        %675 = vmatprep.subr.mxu0 0.0
        %676 = vmatpush1.xpose.msra.mxu0 %v620
        %677 = vmatprep.subr.mxu0 0.0
        %678 = vmatpush1.xpose.msra.mxu0 %v619
        %679 = vmatprep.subr.mxu0 0.0
        %680 = vmatpush1.xpose.msra.mxu0 %v618
        %681 = vmatprep.subr.mxu0 0.0
        %682 = vmatpush1.xpose.msra.mxu0 %v617
        %683 = vmatprep.subr.mxu0 0.0
        %684 = vmatpush1.xpose.msra.mxu0 %v616
        %685 = vmatprep.subr.mxu0 0.0
        %686 = vmatpush1.xpose.msra.mxu0 %v615
        %687 = vmatprep.subr.mxu0 0.0
        %688 = vmatpush1.xpose.msra.mxu0 %v614
        %689 = vmatprep.subr.mxu0 0.0
        %690 = vmatpush1.xpose.msra.mxu0 %v613
        %691 = vmatprep.subr.mxu0 0.0
        %692 = vmatpush1.xpose.msra.mxu0 %v612
        %693 = vmatprep.subr.mxu0 0.0
        %694 = vmatpush1.xpose.msra.mxu0 %v611
        %695 = vmatprep.subr.mxu0 0.0
        %696 = vmatpush2.xpose.msra.mxu0 0.0
        %697 = vmatprep.subr.mxu0 0.0
        %698 = vmatpush2.xpose.msra.mxu0 0.0
        %699 = vmatprep.subr.mxu0 0.0
        %700 = vmatpush2.xpose.msra.mxu0 0.0
        %701 = vmatprep.subr.mxu0 0.0
        %702 = vmatpush2.xpose.msra.mxu0 0.0
        %703 = vmatprep.subr.mxu0 0.0
        %704 = vmatpush2.xpose.msra.mxu0 0.0
        %705 = vmatprep.subr.mxu0 0.0
        %706 = vmatpush2.xpose.msra.mxu0 0.0
        %707 = vmatprep.subr.mxu0 0.0
        %708 = vmatpush2.xpose.msra.mxu0 0.0
        %709 = vmatprep.subr.mxu0 0.0
        %710 = vmatpush2.xpose.msra.mxu0 0.0
        %711 = vmatprep.subr.mxu0 0.0
        %712 = vmatpush2.xpose.msra.mxu0 0.0
        %713 = vmatprep.subr.mxu0 0.0
        %714 = vmatpush2.xpose.msra.mxu0 0.0
        %715 = vmatprep.subr.mxu0 0.0
        %716 = vmatpush2.xpose.msra.mxu0 0.0
        %717 = vmatprep.subr.mxu0 0.0
        %718 = vmatpush2.xpose.msra.mxu0 0.0
        %719 = vmatprep.subr.mxu0 0.0
        %720 = vmatpush2.xpose.msra.mxu0 0.0
        %721 = vmatprep.subr.mxu0 0.0
        %722 = vmatpush2.xpose.msra.mxu0 0.0
        %723 = vmatprep.subr.mxu0 0.0
        %724 = vmatpush2.xpose.msra.mxu0 0.0
        %725 = vmatprep.subr.mxu0 0.0
        %726 = vmatpush2.xpose.msra.mxu0 0.0
        %727 = vmatprep.mubr.f32.mxu0 0.0
        %728 = vmatmul.mubr.f32.gmra.mxu0 %v609
        %v729 = vpop.f32.mrf.mxu0
        %v730 = vadd.f32 0.0, %v729
        %v731 = vpop.f32.mrf.mxu0
        %732 = vdwg.mxu0
        %v733 = vsel %vm421, %v730, -inf
        %734 = vmax.xlane.f32.xlu0 %v733
        %v735 = vpop.xlane.xlu0 %734
        %v736 = vsub.f32 %v730, %v735
        %v737 = vmul.f32 %v736, 1.442695
        %v738 = vpow.pop %v737
        %740 = vrot.lane.b32.xlu0 %v738, 116
        %v741 = vpop.permute.xlu0 %740
        %v743 = vsel %vm432, %v741, 0.0
        %744 = vadd.xlane.f32.xlu0 %v743
        %v745 = vpop.xlane.xlu0 %744
        %v746 = vrcp.pop %v745
        %v747 = vmul.f32 %v745, %v746
        %v748 = vsub.f32 2.0, %v747
        %v749 = vmul.f32 %v746, %v748
        %v750 = vmul.f32 %v738, %v749
        %v751 = vmax.f32 %v730, 0.0
        %752 = vmatprep.subr.mxu0 0.0
        %753 = vmatpush1.xpose.msra.mxu0 %v643
        %754 = vmatprep.subr.mxu0 0.0
        %755 = vmatpush1.xpose.msra.mxu0 %v642
        %756 = vmatprep.subr.mxu0 0.0
        %757 = vmatpush1.xpose.msra.mxu0 %v641
        %758 = vmatprep.subr.mxu0 0.0
        %759 = vmatpush1.xpose.msra.mxu0 %v640
        %760 = vmatprep.subr.mxu0 0.0
        %761 = vmatpush1.xpose.msra.mxu0 %v639
        %762 = vmatprep.subr.mxu0 0.0
        %763 = vmatpush1.xpose.msra.mxu0 %v638
        %764 = vmatprep.subr.mxu0 0.0
        %765 = vmatpush1.xpose.msra.mxu0 %v637
        %766 = vmatprep.subr.mxu0 0.0
        %767 = vmatpush1.xpose.msra.mxu0 %v636
        %768 = vmatprep.subr.mxu0 0.0
        %769 = vmatpush1.xpose.msra.mxu0 %v635
        %770 = vmatprep.subr.mxu0 0.0
        %771 = vmatpush1.xpose.msra.mxu0 %v634
        %772 = vmatprep.subr.mxu0 0.0
        %773 = vmatpush1.xpose.msra.mxu0 %v633
        %774 = vmatprep.subr.mxu0 0.0
        %775 = vmatpush1.xpose.msra.mxu0 %v632
        %776 = vmatprep.subr.mxu0 0.0
        %777 = vmatpush1.xpose.msra.mxu0 %v631
        %778 = vmatprep.subr.mxu0 0.0
        %779 = vmatpush1.xpose.msra.mxu0 %v630
        %780 = vmatprep.subr.mxu0 0.0
        %781 = vmatpush1.xpose.msra.mxu0 %v629
        %782 = vmatprep.subr.mxu0 0.0
        %783 = vmatpush1.xpose.msra.mxu0 %v628
        %784 = vmatprep.subr.mxu0 0.0
        %785 = vmatpush2.xpose.msra.mxu0 0.0
        %786 = vmatprep.subr.mxu0 0.0
        %787 = vmatpush2.xpose.msra.mxu0 0.0
        %788 = vmatprep.subr.mxu0 0.0
        %789 = vmatpush2.xpose.msra.mxu0 0.0
        %790 = vmatprep.subr.mxu0 0.0
        %791 = vmatpush2.xpose.msra.mxu0 0.0
        %792 = vmatprep.subr.mxu0 0.0
        %793 = vmatpush2.xpose.msra.mxu0 0.0
        %794 = vmatprep.subr.mxu0 0.0
        %795 = vmatpush2.xpose.msra.mxu0 0.0
        %796 = vmatprep.subr.mxu0 0.0
        %797 = vmatpush2.xpose.msra.mxu0 0.0
        %798 = vmatprep.subr.mxu0 0.0
        %799 = vmatpush2.xpose.msra.mxu0 0.0
        %800 = vmatprep.subr.mxu0 0.0
        %801 = vmatpush2.xpose.msra.mxu0 0.0
        %802 = vmatprep.subr.mxu0 0.0
        %803 = vmatpush2.xpose.msra.mxu0 0.0
        %804 = vmatprep.subr.mxu0 0.0
        %805 = vmatpush2.xpose.msra.mxu0 0.0
        %806 = vmatprep.subr.mxu0 0.0
        %807 = vmatpush2.xpose.msra.mxu0 0.0
        %808 = vmatprep.subr.mxu0 0.0
        %809 = vmatpush2.xpose.msra.mxu0 0.0
        %810 = vmatprep.subr.mxu0 0.0
        %811 = vmatpush2.xpose.msra.mxu0 0.0
        %812 = vmatprep.subr.mxu0 0.0
        %813 = vmatpush2.xpose.msra.mxu0 0.0
        %814 = vmatprep.subr.mxu0 0.0
        %815 = vmatpush2.xpose.msra.mxu0 0.0
        %816 = vmatprep.mubr.f32.mxu0 0.0
        %817 = vmatmul.mubr.f32.gmra.mxu0 %v751
        %v818 = vpop.f32.mrf.mxu0
        %v819 = vadd.f32 0.0, %v818
        %v820 = vpop.f32.mrf.mxu0
        %821 = vdwg.mxu0
        %v822 = vmax.f32 %v819, 0.0
        %824 = vset.pattern.permute.xlu0 12
        %825 = vperm.xlu0 %824, %v750
        %v826 = vpop.permute.xlu0 %825
        %v828 = vmul.f32 %v291, %v826
        %829 = vset.pattern.permute.xlu0 13
        %830 = vperm.xlu0 %829, %v750
        %v831 = vpop.permute.xlu0 %830
        %v833 = vmul.f32 %v296, %v831
        %v834 = vadd.f32 %v828, %v833
        %835 = vset.pattern.permute.xlu0 14
        %836 = vperm.xlu0 %835, %v750
        %v837 = vpop.permute.xlu0 %836
        %v839 = vmul.f32 %v301, %v837
        %v840 = vadd.f32 %v834, %v839
        %v841 = vmul.f32 %v822, %v840
        %v843 = vlaneseq
        %v844 = vshrl.u32 %v843, 7
        %v845 = vsub.s32 0, %v844
        %v846 = vrot.slane %v662, %v845
        %848 = vmatprep.subr.mxu0 0.0
        %849 = vmatpush1.msra.mxu0 %v660
        %850 = vmatprep.subr.mxu0 0.0
        %851 = vmatpush1.msra.mxu0 %v659
        %852 = vmatprep.subr.mxu0 0.0
        %853 = vmatpush1.msra.mxu0 %v658
        %854 = vmatprep.subr.mxu0 0.0
        %855 = vmatpush1.msra.mxu0 %v657
        %856 = vmatprep.subr.mxu0 0.0
        %857 = vmatpush1.msra.mxu0 %v656
        %858 = vmatprep.subr.mxu0 0.0
        %859 = vmatpush1.msra.mxu0 %v655
        %860 = vmatprep.subr.mxu0 0.0
        %861 = vmatpush1.msra.mxu0 %v654
        %862 = vmatprep.subr.mxu0 0.0
        %863 = vmatpush1.msra.mxu0 %v653
        %864 = vmatprep.subr.mxu0 0.0
        %865 = vmatpush1.msra.mxu0 %v652
        %866 = vmatprep.subr.mxu0 0.0
        %867 = vmatpush1.msra.mxu0 %v651
        %868 = vmatprep.subr.mxu0 0.0
        %869 = vmatpush1.msra.mxu0 %v650
        %870 = vmatprep.subr.mxu0 0.0
        %871 = vmatpush1.msra.mxu0 %v649
        %872 = vmatprep.subr.mxu0 0.0
        %873 = vmatpush1.msra.mxu0 %v648
        %874 = vmatprep.subr.mxu0 0.0
        %875 = vmatpush1.msra.mxu0 %v647
        %876 = vmatprep.subr.mxu0 0.0
        %877 = vmatpush1.msra.mxu0 %v646
        %878 = vmatprep.subr.mxu0 0.0
        %879 = vmatpush1.msra.mxu0 %v645
        %880 = vmatprep.subr.mxu0 0.0
        %881 = vmatpush2.msra.mxu0 0.0
        %882 = vmatprep.subr.mxu0 0.0
        %883 = vmatpush2.msra.mxu0 0.0
        %884 = vmatprep.subr.mxu0 0.0
        %885 = vmatpush2.msra.mxu0 0.0
        %886 = vmatprep.subr.mxu0 0.0
        %887 = vmatpush2.msra.mxu0 0.0
        %888 = vmatprep.subr.mxu0 0.0
        %889 = vmatpush2.msra.mxu0 0.0
        %890 = vmatprep.subr.mxu0 0.0
        %891 = vmatpush2.msra.mxu0 0.0
        %892 = vmatprep.subr.mxu0 0.0
        %893 = vmatpush2.msra.mxu0 0.0
        %894 = vmatprep.subr.mxu0 0.0
        %895 = vmatpush2.msra.mxu0 0.0
        %896 = vmatprep.subr.mxu0 0.0
        %897 = vmatpush2.msra.mxu0 0.0
        %898 = vmatprep.subr.mxu0 0.0
        %899 = vmatpush2.msra.mxu0 0.0
        %900 = vmatprep.subr.mxu0 0.0
        %901 = vmatpush2.msra.mxu0 0.0
        %902 = vmatprep.subr.mxu0 0.0
        %903 = vmatpush2.msra.mxu0 0.0
        %904 = vmatprep.subr.mxu0 0.0
        %905 = vmatpush2.msra.mxu0 0.0
        %906 = vmatprep.subr.mxu0 0.0
        %907 = vmatpush2.msra.mxu0 0.0
        %908 = vmatprep.subr.mxu0 0.0
        %909 = vmatpush2.msra.mxu0 0.0
        %910 = vmatprep.subr.mxu0 0.0
        %911 = vmatpush2.msra.mxu0 0.0
        %912 = vmatprep.mubr.f32.mxu0 0.0
        %913 = vmatmul.mubr.f32.gmra.mxu0 %v841
        %v914 = vpop.f32.mrf.mxu0
        %v915 = vadd.f32 %v846, %v914
        %v916 = vpop.f32.mrf.mxu0
        %917 = vdwg.mxu0
        %v918 = vmul.f32 %v284, %v915
        %v919 = vadd.f32 %v918, %v609
        %920 = vst [vmem:[%s283] sm:$0xff] %v919
        %s921 = sand.u32 %s142, 1
        %s922 = scalar_lea.sflag [#allocation4], %s921
        %s923 = sand.u32 %s142, 1
        %s924 = smul.addr %s923, 8
        %s925 = scalar_lea.vmem [#allocation10], %s924
        // Predicated region
        $region57: #{tpu_custom_call.1} parent=39 // pred_check
          %p926 = pneg %p152
        $region58: #{tpu_custom_call.1} parent=39 // pred_check_branch
          %928 = sbr.rel (%p926) target = $region60
        $region59: #{tpu_custom_call.1} parent=39 // pred_region
          %s930 = ssub.s32 128, 128
          %931 = vsyncadd %s922, %s930
          %s932 = smul.addr %s24, 128
          %s933 = scalar_lea.hbm %s5, %s932
          %s935 = sshll.u32 %s925, 4
          %s936 = int_to_ptr.vmem [resolvable:$true] %s935
          %938 = dma.vmem_to_hbm [thread:$0]  %s936, 128, %s933, %s922
        $region60: #{tpu_custom_call.1} parent=39 // pred_fallthru
          _
      $region40: #{tpu_custom_call.1} parent=5 // pred_fallthru
        _
      %p939 = scmp.le.s32.totalorder 2, %s19
      // Predicated region
      $region61: #{tpu_custom_call.1} parent=5 // pred_check
        %p940 = pneg %p939
      $region62: #{tpu_custom_call.1} parent=5 // pred_check_branch
        %942 = sbr.rel (%p940) target = $region64
      $region63: #{tpu_custom_call.1} parent=5 // pred_region
        %s943 = ssub.s32 %s19, 2
        // Predicated region
        $region65: #{tpu_custom_call.1} parent=63 // pred_check
          %p944 = pneg %p158
        $region66: #{tpu_custom_call.1} parent=63 // pred_check_branch
          %946 = sbr.rel (%p944) target = $region68
        $region67: #{tpu_custom_call.1} parent=63 // pred_region
          %s947 = sand.u32 %s143, 1
          %s948 = scalar_lea.sflag [#allocation4], %s947
          %s949 = sand.u32 %s143, 1
          %s950 = smul.addr %s949, 8
          %s951 = scalar_lea.vmem [#allocation10], %s950
          %952 = dma.done %s948, 128
        $region68: #{tpu_custom_call.1} parent=63 // pred_fallthru
          _
      $region64: #{tpu_custom_call.1} parent=5 // pred_fallthru
        _
    $region6: #{tpu_custom_call.1} parent=1 // loop_footer
      %s23 = sadd.s32 1, %s19
    $region7: #{tpu_custom_call.1} parent=1 // loop_footer_branch
      %18 = sbr.rel target = $region3
    $region8: #{tpu_custom_call.1} parent=1 // loop_exit
      _
    %953 = vsyncpa [#allocation3], 1
    %s954 = scalar_lea.sflag [#allocation3], 1
    %955 = vsyncpa %s954, 1
    %956 = vsyncpa [#allocation6], 1
    %957 = vsyncpa [#allocation9], 1
    %958 = vsyncpa [#allocation4], 1
    %s959 = scalar_lea.sflag [#allocation4], 1
    %960 = vsyncpa %s959, 1

// kernel: tpu_custom_call.1
$region0: #{tpu_custom_call.1}
  #allocation0 [shape = 'u32[]', space=smem, size = 0x4, offset = 0x4, fixed_abs, tag = 'smem constant byte address 0x4 - core index']
  #allocation1 [shape = 'u32[144,128]{1,0:T(1,128)}', space=vmem, size = 0x12000, scoped, tag = 'internal scratch']
  %s0 = inlined_call_operand.hbm [shape: f32[16,128], index: 0, kind: input, shape index: {}]
  %s1 = inlined_call_operand.hbm [shape: f32[2,128,128], index: 1, kind: input, shape index: {}]
  %s2 = inlined_call_operand.hbm [shape: f32[2,128,128], index: 2, kind: input, shape index: {}]
  %s3 = inlined_call_operand.hbm [shape: f32[2,128,128], index: 3, kind: input, shape index: {}]
  %s4 = inlined_call_operand.vmem [shape: f32[2,1,128], index: 4, kind: input, shape index: {}]
  %s5 = inlined_call_operand.hbm [shape: f32[16,128], index: 5, kind: output, shape index: {}]
  %s6 = sld [smem:[#allocation0]]
  $region69: #{tpu_custom_call.1} parent=0
    _
  %s8 = ssub.s32 1, %s6
  %s9 = scalar_select 0, %s8, %s6
  $region1: #{tpu_custom_call.1} parent=0
    #allocation2 [shape = 'u8[8192]{0}', space=vmem, size = 0x2000, scoped, tag = 'input window, operand 0']
    #allocation3 [shape = 's32[2]{0}', space=sflag, size = 0x8, scoped, tag = 'scoped memory for tpu_custom_call.1']
    #allocation4 [shape = 's32[2]{0}', space=sflag, size = 0x8, scoped, tag = 'scoped memory for tpu_custom_call.1']
    #allocation5 [shape = 'u8[131072]{0}', space=vmem, size = 0x20000, scoped, tag = 'input window, operand 1, single buffered']
    #allocation6 [shape = 's32[1]{0}', space=sflag, size = 0x4, scoped, tag = 'scoped memory for tpu_custom_call.1']
    #allocation7 [shape = 'u8[131072]{0}', space=vmem, size = 0x20000, scoped, tag = 'input window, operand 2, single buffered']
    #allocation8 [shape = 'u8[131072]{0}', space=vmem, size = 0x20000, scoped, tag = 'input window, operand 3, single buffered']
    #allocation9 [shape = 's32[1]{0}', space=sflag, size = 0x4, scoped, tag = 'scoped memory for tpu_custom_call.1']
    #allocation10 [shape = 'u8[8192]{0}', space=vmem, size = 0x2000, scoped, tag = 'output window, operand 0']
    %10 = vsyncpa [#allocation3], 0
    %s11 = scalar_lea.sflag [#allocation3], 1
    %12 = vsyncpa %s11, 0
    %13 = vsyncpa [#allocation6], 0
    %14 = vsyncpa [#allocation9], 0
    %15 = vsyncpa [#allocation4], 0
    %s16 = scalar_lea.sflag [#allocation4], 1
    %17 = vsyncpa %s16, 0
    loop: start=0, step=1, limit=4
    $region2: #{tpu_custom_call.1} parent=1 // loop_pre_header
      _
    $region3: #{tpu_custom_call.1} parent=1 // loop_header
      %s19 = sphi 0, %s23
      %p20 = scmp.ge.s32.totalorder %s19, 4
      %s29 = sphi 0, %s31
      %s32 = sphi 0, %s29
      %s33 = sphi 0, %s32
      %s49 = sphi 0, %s33
      %s53 = sphi 0, %s53
      %s55 = sphi 0, %s53
      %s56 = sphi 0, %s55
      %s70 = sphi 0, %s56
      %s74 = sphi 0, %s74
      %s76 = sphi 0, %s74
      %s77 = sphi 0, %s76
      %s91 = sphi 0, %s77
      %s95 = sphi 0, %s95
      %s97 = sphi 0, %s95
      %s98 = sphi 0, %s97
      %s112 = sphi 0, %s98
      %s116 = sphi 0, %s116
      %s118 = sphi 0, %s116
      %s119 = sphi 0, %s118
      %s133 = sphi 0, %s119
      %s139 = sphi 0, %s141
      %s142 = sphi 0, %s139
      %s143 = sphi 0, %s142
      %s159 = sphi 0, %s143
    $region4: #{tpu_custom_call.1} parent=1 // loop_header_branch
      %22 = sbr.rel (%p20) target = $region8
    $region5: #{tpu_custom_call.1} parent=1 // loop_body
      %s24 = ssub.s32 %s19, 1
      %s25 = ssub.s32 %s19, 2
      %s26 = sadd.s32 %s19, 1
      %s27 = ssub.s32 %s19, %s26
      %p28 = scmp.eq.s32.totalorder %s27, 0
      %s30 = sadd.s32 %s29, 1
      %s31 = scalar_select %p28, %s29, %s30
      %p34 = pneg %p28
      %p35 = scmp.eq.s32.totalorder %s19, 1
      %p36 = por %p34, %p35
      %p37 = scmp.ne.s32.totalorder %s29, %s32
      %p38 = scmp.eq.s32.totalorder %s19, 0
      %p39 = por %p37, %p38
      %p40 = scmp.ne.s32.totalorder %s29, %s32
      %p41 = scmp.eq.s32.totalorder %s24, 1
      %p42 = por %p40, %p41
      %p43 = scmp.ne.s32.totalorder %s32, %s33
      %p44 = scmp.eq.s32.totalorder %s24, 0
      %p45 = por %p43, %p44
      %p46 = scmp.ne.s32.totalorder %s32, %s33
      %p47 = scmp.eq.s32.totalorder %s25, 1
      %p48 = por %p46, %p47
      %p50 = scmp.ne.s32.totalorder %s33, %s49
      %p51 = scmp.eq.s32.totalorder %s25, 0
      %p52 = por %p50, %p51
      %s54 = sadd.s32 %s53, 1
      %p57 = scmp.eq.s32.totalorder %s19, 1
      %p58 = scmp.ne.s32.totalorder %s53, %s55
      %p59 = scmp.eq.s32.totalorder %s19, 0
      %p60 = por %p58, %p59
      %p61 = scmp.ne.s32.totalorder %s53, %s55
      %p62 = scmp.eq.s32.totalorder %s24, 1
      %p63 = por %p61, %p62
      %p64 = scmp.ne.s32.totalorder %s55, %s56
      %p65 = scmp.eq.s32.totalorder %s24, 0
      %p66 = por %p64, %p65
      %p67 = scmp.ne.s32.totalorder %s55, %s56
      %p68 = scmp.eq.s32.totalorder %s25, 1
      %p69 = por %p67, %p68
      %p71 = scmp.ne.s32.totalorder %s56, %s70
      %p72 = scmp.eq.s32.totalorder %s25, 0
      %p73 = por %p71, %p72
      %s75 = sadd.s32 %s74, 1
      %p78 = scmp.eq.s32.totalorder %s19, 1
      %p79 = scmp.ne.s32.totalorder %s74, %s76
      %p80 = scmp.eq.s32.totalorder %s19, 0
      %p81 = por %p79, %p80
      %p82 = scmp.ne.s32.totalorder %s74, %s76
      %p83 = scmp.eq.s32.totalorder %s24, 1
      %p84 = por %p82, %p83
      %p85 = scmp.ne.s32.totalorder %s76, %s77
      %p86 = scmp.eq.s32.totalorder %s24, 0
      %p87 = por %p85, %p86
      %p88 = scmp.ne.s32.totalorder %s76, %s77
      %p89 = scmp.eq.s32.totalorder %s25, 1
      %p90 = por %p88, %p89
      %p92 = scmp.ne.s32.totalorder %s77, %s91
      %p93 = scmp.eq.s32.totalorder %s25, 0
      %p94 = por %p92, %p93
      %s96 = sadd.s32 %s95, 1
      %p99 = scmp.eq.s32.totalorder %s19, 1
      %p100 = scmp.ne.s32.totalorder %s95, %s97
      %p101 = scmp.eq.s32.totalorder %s19, 0
      %p102 = por %p100, %p101
      %p103 = scmp.ne.s32.totalorder %s95, %s97
      %p104 = scmp.eq.s32.totalorder %s24, 1
      %p105 = por %p103, %p104
      %p106 = scmp.ne.s32.totalorder %s97, %s98
      %p107 = scmp.eq.s32.totalorder %s24, 0
      %p108 = por %p106, %p107
      %p109 = scmp.ne.s32.totalorder %s97, %s98
      %p110 = scmp.eq.s32.totalorder %s25, 1
      %p111 = por %p109, %p110
      %p113 = scmp.ne.s32.totalorder %s98, %s112
      %p114 = scmp.eq.s32.totalorder %s25, 0
      %p115 = por %p113, %p114
      %s117 = sadd.s32 %s116, 1
      %p120 = scmp.eq.s32.totalorder %s19, 1
      %p121 = scmp.ne.s32.totalorder %s116, %s118
      %p122 = scmp.eq.s32.totalorder %s19, 0
      %p123 = por %p121, %p122
      %p124 = scmp.ne.s32.totalorder %s116, %s118
      %p125 = scmp.eq.s32.totalorder %s24, 1
      %p126 = por %p124, %p125
      %p127 = scmp.ne.s32.totalorder %s118, %s119
      %p128 = scmp.eq.s32.totalorder %s24, 0
      %p129 = por %p127, %p128
      %p130 = scmp.ne.s32.totalorder %s118, %s119
      %p131 = scmp.eq.s32.totalorder %s25, 1
      %p132 = por %p130, %p131
      %p134 = scmp.ne.s32.totalorder %s119, %s133
      %p135 = scmp.eq.s32.totalorder %s25, 0
      %p136 = por %p134, %p135
      %s137 = ssub.s32 %s19, %s26
      %p138 = scmp.eq.s32.totalorder %s137, 0
      %s140 = sadd.s32 %s139, 1
      %s141 = scalar_select %p138, %s139, %s140
      %p144 = pneg %p138
      %p145 = scmp.eq.s32.totalorder %s19, 1
      %p146 = por %p144, %p145
      %p147 = scmp.ne.s32.totalorder %s139, %s142
      %p148 = scmp.eq.s32.totalorder %s19, 0
      %p149 = por %p147, %p148
      %p150 = scmp.ne.s32.totalorder %s139, %s142
      %p151 = scmp.eq.s32.totalorder %s24, 1
      %p152 = por %p150, %p151
      %p153 = scmp.ne.s32.totalorder %s142, %s143
      %p154 = scmp.eq.s32.totalorder %s24, 0
      %p155 = por %p153, %p154
      %p156 = scmp.ne.s32.totalorder %s142, %s143
      %p157 = scmp.eq.s32.totalorder %s25, 1
      %p158 = por %p156, %p157
      %p160 = scmp.ne.s32.totalorder %s143, %s159
      %p161 = scmp.eq.s32.totalorder %s25, 0
      %p162 = por %p160, %p161
      %p163 = scmp.le.s32.totalorder 1, %s19
      %p164 = scmp.lt.s32.totalorder %s19, 3
      %p165 = pnand %p163, %p164
      %p166 = pneg %p165
      // Predicated region
      $region9: #{tpu_custom_call.1} parent=5 // pred_check
        _
      $region10: #{tpu_custom_call.1} parent=5 // pred_check_branch
        %168 = sbr.rel (%p165) target = $region12
      $region11: #{tpu_custom_call.1} parent=5 // pred_region
        %s169 = ssub.s32 %s19, 1
        // Predicated region
        $region13: #{tpu_custom_call.1} parent=11 // pred_check
          %p170 = pneg %p66
        $region14: #{tpu_custom_call.1} parent=11 // pred_check_branch
          %172 = sbr.rel (%p170) target = $region16
        $region15: #{tpu_custom_call.1} parent=11 // pred_region
          %s174 = ssub.s32 4096, 4096
          %175 = vsyncadd [#allocation6], %s174
          %s176 = sshll.u32 [#allocation5], 4
          %s177 = int_to_ptr.vmem [resolvable:$true] %s176
          %182 = dma.hbm_to_vmem [thread:$0]  %s1, 4096, %s177, [#allocation6], 128, 128, 8
        $region16: #{tpu_custom_call.1} parent=11 // pred_fallthru
          _
        // Predicated region
        $region17: #{tpu_custom_call.1} parent=11 // pred_check
          %p183 = pneg %p87
        $region18: #{tpu_custom_call.1} parent=11 // pred_check_branch
          %185 = sbr.rel (%p183) target = $region20
        $region19: #{tpu_custom_call.1} parent=11 // pred_region
          %s187 = ssub.s32 4096, 4096
          %188 = vsyncadd [#allocation6], %s187
          %s189 = sshll.u32 [#allocation7], 4
          %s190 = int_to_ptr.vmem [resolvable:$true] %s189
          %195 = dma.hbm_to_vmem [thread:$0]  %s2, 4096, %s190, [#allocation6], 128, 128, 8
        $region20: #{tpu_custom_call.1} parent=11 // pred_fallthru
          _
        // Predicated region
        $region21: #{tpu_custom_call.1} parent=11 // pred_check
          %p196 = pneg %p108
        $region22: #{tpu_custom_call.1} parent=11 // pred_check_branch
          %198 = sbr.rel (%p196) target = $region24
        $region23: #{tpu_custom_call.1} parent=11 // pred_region
          %s200 = ssub.s32 4096, 4096
          %201 = vsyncadd [#allocation9], %s200
          %s202 = sshll.u32 [#allocation8], 4
          %s203 = int_to_ptr.vmem [resolvable:$true] %s202
          %208 = dma.hbm_to_vmem [thread:$0]  %s3, 4096, %s203, [#allocation9], 128, 128, 8
        $region24: #{tpu_custom_call.1} parent=11 // pred_fallthru
          _
        // Predicated region
        $region25: #{tpu_custom_call.1} parent=11 // pred_check
          %p209 = pneg %p129
        $region26: #{tpu_custom_call.1} parent=11 // pred_check_branch
          %211 = sbr.rel (%p209) target = $region28
        $region27: #{tpu_custom_call.1} parent=11 // pred_region
          _
        $region28: #{tpu_custom_call.1} parent=11 // pred_fallthru
          _
      $region12: #{tpu_custom_call.1} parent=5 // pred_fallthru
        _
      %p212 = scmp.lt.s32.totalorder %s19, 2
      // Predicated region
      $region29: #{tpu_custom_call.1} parent=5 // pred_check
        %p213 = pneg %p212
      $region30: #{tpu_custom_call.1} parent=5 // pred_check_branch
        %215 = sbr.rel (%p213) target = $region32
      $region31: #{tpu_custom_call.1} parent=5 // pred_region
        // Predicated region
        $region33: #{tpu_custom_call.1} parent=31 // pred_check
          %p216 = pneg %p39
        $region34: #{tpu_custom_call.1} parent=31 // pred_check_branch
          %218 = sbr.rel (%p216) target = $region36
        $region35: #{tpu_custom_call.1} parent=31 // pred_region
          %s219 = sand.u32 %s29, 1
          %s220 = scalar_lea.sflag [#allocation3], %s219
          %s221 = sand.u32 %s29, 1
          %s222 = smul.addr %s221, 8
          %s223 = scalar_lea.vmem [#allocation2], %s222
          %s225 = ssub.s32 128, 128
          %226 = vsyncadd %s220, %s225
          %s227 = smul.addr %s19, 128
          %s228 = scalar_lea.hbm %s0, %s227
          %s230 = sshll.u32 %s223, 4
          %s231 = int_to_ptr.vmem [resolvable:$true] %s230
          %233 = dma.hbm_to_vmem [thread:$0]  %s228, 128, %s231, %s220
        $region36: #{tpu_custom_call.1} parent=31 // pred_fallthru
          _
      $region32: #{tpu_custom_call.1} parent=5 // pred_fallthru
        _
      %p234 = scmp.le.s32.totalorder 1, %s19
      %p235 = scmp.lt.s32.totalorder %s19, 3
      %p236 = pnand %p234, %p235
      %p237 = pneg %p236
      // Predicated region
      $region37: #{tpu_custom_call.1} parent=5 // pred_check
        _
      $region38: #{tpu_custom_call.1} parent=5 // pred_check_branch
        %239 = sbr.rel (%p236) target = $region40
      $region39: #{tpu_custom_call.1} parent=5 // pred_region
        %s240 = ssub.s32 %s19, 1
        %s241 = sand.u32 %s32, 1
        %s242 = scalar_lea.sflag [#allocation3], %s241
        %s243 = sand.u32 %s32, 1
        %s244 = smul.addr %s243, 8
        %s245 = scalar_lea.vmem [#allocation2], %s244
        // Predicated region
        $region41: #{tpu_custom_call.1} parent=39 // pred_check
          %p246 = pneg %p45
        $region42: #{tpu_custom_call.1} parent=39 // pred_check_branch
          %248 = sbr.rel (%p246) target = $region44
        $region43: #{tpu_custom_call.1} parent=39 // pred_region
          %249 = dma.done %s242, 128
        $region44: #{tpu_custom_call.1} parent=39 // pred_fallthru
          _
        // Predicated region
        $region45: #{tpu_custom_call.1} parent=39 // pred_check
          %p250 = pneg %p66
        $region46: #{tpu_custom_call.1} parent=39 // pred_check_branch
          %252 = sbr.rel (%p250) target = $region48
        $region47: #{tpu_custom_call.1} parent=39 // pred_region
          %253 = dma.done [#allocation6], 4096
        $region48: #{tpu_custom_call.1} parent=39 // pred_fallthru
          _
        // Predicated region
        $region49: #{tpu_custom_call.1} parent=39 // pred_check
          %p254 = pneg %p87
        $region50: #{tpu_custom_call.1} parent=39 // pred_check_branch
          %256 = sbr.rel (%p254) target = $region52
        $region51: #{tpu_custom_call.1} parent=39 // pred_region
          %257 = dma.done [#allocation6], 4096
        $region52: #{tpu_custom_call.1} parent=39 // pred_fallthru
          _
        // Predicated region
        $region53: #{tpu_custom_call.1} parent=39 // pred_check
          %p258 = pneg %p108
        $region54: #{tpu_custom_call.1} parent=39 // pred_check_branch
          %260 = sbr.rel (%p258) target = $region56
        $region55: #{tpu_custom_call.1} parent=39 // pred_region
          %261 = dma.done [#allocation9], 4096
        $region56: #{tpu_custom_call.1} parent=39 // pred_fallthru
          _
        %s262 = sand.u32 %s32, 1
        %s263 = scalar_lea.sflag [#allocation3], %s262
        %s264 = sand.u32 %s32, 1
        %s265 = smul.addr %s264, 8
        %s266 = scalar_lea.vmem [#allocation2], %s265
        %p267 = pneg %p45
        %p268 = pneg %p42
        %p269 = pneg %p66
        %p270 = pneg %p63
        %p271 = pneg %p87
        %p272 = pneg %p84
        %p273 = pneg %p108
        %p274 = pneg %p105
        %p275 = pneg %p129
        %p276 = pneg %p126
        %p277 = pneg %p155
        %p278 = pneg %p152
        %s279 = sand.u32 %s142, 1
        %s280 = scalar_lea.sflag [#allocation4], %s279
        %s281 = sand.u32 %s142, 1
        %s282 = smul.addr %s281, 8
        %s283 = scalar_lea.vmem [#allocation10], %s282
        %v284 = vld [vmem:[%s245] sm:$0xff]
        %v285 = vlaneseq
        %v286 = vand.u32 %v285, 127
        %vm287 = vcmp.ge.s32.totalorder %v286, 0
        %vm288 = vcmp.lt.s32.totalorder %v286, 4
        %vm289 = vmand %vm287, %vm288
        %v290 = vsel %vm289, 1, 0
        %v291 = vcvt.s32.f32 %v290
        %vm292 = vcmp.ge.s32.totalorder %v286, 4
        %vm293 = vcmp.lt.s32.totalorder %v286, 8
        %vm294 = vmand %vm292, %vm293
        %v295 = vsel %vm294, 1, 0
        %v296 = vcvt.s32.f32 %v295
        %vm297 = vcmp.ge.s32.totalorder %v286, 8
        %vm298 = vcmp.lt.s32.totalorder %v286, 12
        %vm299 = vmand %vm297, %vm298
        %v300 = vsel %vm299, 1, 0
        %v301 = vcvt.s32.f32 %v300
        %v302 = vld [vmem:[#allocation5] sm:$0xff]
        %v303 = vld [vmem:[#allocation5 + $0x8] sm:$0xff]
        %v304 = vld [vmem:[#allocation5 + $0x10] sm:$0xff]
        %v305 = vld [vmem:[#allocation5 + $0x18] sm:$0xff]
        %v306 = vld [vmem:[#allocation5 + $0x20] sm:$0xff]
        %v307 = vld [vmem:[#allocation5 + $0x28] sm:$0xff]
        %v308 = vld [vmem:[#allocation5 + $0x30] sm:$0xff]
        %v309 = vld [vmem:[#allocation5 + $0x38] sm:$0xff]
        %v310 = vld [vmem:[#allocation5 + $0x40] sm:$0xff]
        %v311 = vld [vmem:[#allocation5 + $0x48] sm:$0xff]
        %v312 = vld [vmem:[#allocation5 + $0x50] sm:$0xff]
        %v313 = vld [vmem:[#allocation5 + $0x58] sm:$0xff]
        %v314 = vld [vmem:[#allocation5 + $0x60] sm:$0xff]
        %v315 = vld [vmem:[#allocation5 + $0x68] sm:$0xff]
        %v316 = vld [vmem:[#allocation5 + $0x70] sm:$0xff]
        %v317 = vld [vmem:[#allocation5 + $0x78] sm:$0xff]
        %v318 = vld [vmem:[#allocation7] sm:$0xff]
        %v319 = vld [vmem:[#allocation7 + $0x8] sm:$0xff]
        %v320 = vld [vmem:[#allocation7 + $0x10] sm:$0xff]
        %v321 = vld [vmem:[#allocation7 + $0x18] sm:$0xff]
        %v322 = vld [vmem:[#allocation7 + $0x20] sm:$0xff]
        %v323 = vld [vmem:[#allocation7 + $0x28] sm:$0xff]
        %v324 = vld [vmem:[#allocation7 + $0x30] sm:$0xff]
        %v325 = vld [vmem:[#allocation7 + $0x38] sm:$0xff]
        %v326 = vld [vmem:[#allocation7 + $0x40] sm:$0xff]
        %v327 = vld [vmem:[#allocation7 + $0x48] sm:$0xff]
        %v328 = vld [vmem:[#allocation7 + $0x50] sm:$0xff]
        %v329 = vld [vmem:[#allocation7 + $0x58] sm:$0xff]
        %v330 = vld [vmem:[#allocation7 + $0x60] sm:$0xff]
        %v331 = vld [vmem:[#allocation7 + $0x68] sm:$0xff]
        %v332 = vld [vmem:[#allocation7 + $0x70] sm:$0xff]
        %v333 = vld [vmem:[#allocation7 + $0x78] sm:$0xff]
        %v334 = vld [vmem:[#allocation8] sm:$0xff]
        %v335 = vld [vmem:[#allocation8 + $0x8] sm:$0xff]
        %v336 = vld [vmem:[#allocation8 + $0x10] sm:$0xff]
        %v337 = vld [vmem:[#allocation8 + $0x18] sm:$0xff]
        %v338 = vld [vmem:[#allocation8 + $0x20] sm:$0xff]
        %v339 = vld [vmem:[#allocation8 + $0x28] sm:$0xff]
        %v340 = vld [vmem:[#allocation8 + $0x30] sm:$0xff]
        %v341 = vld [vmem:[#allocation8 + $0x38] sm:$0xff]
        %v342 = vld [vmem:[#allocation8 + $0x40] sm:$0xff]
        %v343 = vld [vmem:[#allocation8 + $0x48] sm:$0xff]
        %v344 = vld [vmem:[#allocation8 + $0x50] sm:$0xff]
        %v345 = vld [vmem:[#allocation8 + $0x58] sm:$0xff]
        %v346 = vld [vmem:[#allocation8 + $0x60] sm:$0xff]
        %v347 = vld [vmem:[#allocation8 + $0x68] sm:$0xff]
        %v348 = vld [vmem:[#allocation8 + $0x70] sm:$0xff]
        %v349 = vld [vmem:[#allocation8 + $0x78] sm:$0xff]
        %v350 = vld [vmem:[%s4] sm:$0x1]
        %351 = vmatprep.subr.mxu0 0.0
        %352 = vmatpush1.xpose.msra.mxu0 %v317
        %353 = vmatprep.subr.mxu0 0.0
        %354 = vmatpush1.xpose.msra.mxu0 %v316
        %355 = vmatprep.subr.mxu0 0.0
        %356 = vmatpush1.xpose.msra.mxu0 %v315
        %357 = vmatprep.subr.mxu0 0.0
        %358 = vmatpush1.xpose.msra.mxu0 %v314
        %359 = vmatprep.subr.mxu0 0.0
        %360 = vmatpush1.xpose.msra.mxu0 %v313
        %361 = vmatprep.subr.mxu0 0.0
        %362 = vmatpush1.xpose.msra.mxu0 %v312
        %363 = vmatprep.subr.mxu0 0.0
        %364 = vmatpush1.xpose.msra.mxu0 %v311
        %365 = vmatprep.subr.mxu0 0.0
        %366 = vmatpush1.xpose.msra.mxu0 %v310
        %367 = vmatprep.subr.mxu0 0.0
        %368 = vmatpush1.xpose.msra.mxu0 %v309
        %369 = vmatprep.subr.mxu0 0.0
        %370 = vmatpush1.xpose.msra.mxu0 %v308
        %371 = vmatprep.subr.mxu0 0.0
        %372 = vmatpush1.xpose.msra.mxu0 %v307
        %373 = vmatprep.subr.mxu0 0.0
        %374 = vmatpush1.xpose.msra.mxu0 %v306
        %375 = vmatprep.subr.mxu0 0.0
        %376 = vmatpush1.xpose.msra.mxu0 %v305
        %377 = vmatprep.subr.mxu0 0.0
        %378 = vmatpush1.xpose.msra.mxu0 %v304
        %379 = vmatprep.subr.mxu0 0.0
        %380 = vmatpush1.xpose.msra.mxu0 %v303
        %381 = vmatprep.subr.mxu0 0.0
        %382 = vmatpush1.xpose.msra.mxu0 %v302
        %383 = vmatprep.subr.mxu0 0.0
        %384 = vmatpush2.xpose.msra.mxu0 0.0
        %385 = vmatprep.subr.mxu0 0.0
        %386 = vmatpush2.xpose.msra.mxu0 0.0
        %387 = vmatprep.subr.mxu0 0.0
        %388 = vmatpush2.xpose.msra.mxu0 0.0
        %389 = vmatprep.subr.mxu0 0.0
        %390 = vmatpush2.xpose.msra.mxu0 0.0
        %391 = vmatprep.subr.mxu0 0.0
        %392 = vmatpush2.xpose.msra.mxu0 0.0
        %393 = vmatprep.subr.mxu0 0.0
        %394 = vmatpush2.xpose.msra.mxu0 0.0
        %395 = vmatprep.subr.mxu0 0.0
        %396 = vmatpush2.xpose.msra.mxu0 0.0
        %397 = vmatprep.subr.mxu0 0.0
        %398 = vmatpush2.xpose.msra.mxu0 0.0
        %399 = vmatprep.subr.mxu0 0.0
        %400 = vmatpush2.xpose.msra.mxu0 0.0
        %401 = vmatprep.subr.mxu0 0.0
        %402 = vmatpush2.xpose.msra.mxu0 0.0
        %403 = vmatprep.subr.mxu0 0.0
        %404 = vmatpush2.xpose.msra.mxu0 0.0
        %405 = vmatprep.subr.mxu0 0.0
        %406 = vmatpush2.xpose.msra.mxu0 0.0
        %407 = vmatprep.subr.mxu0 0.0
        %408 = vmatpush2.xpose.msra.mxu0 0.0
        %409 = vmatprep.subr.mxu0 0.0
        %410 = vmatpush2.xpose.msra.mxu0 0.0
        %411 = vmatprep.subr.mxu0 0.0
        %412 = vmatpush2.xpose.msra.mxu0 0.0
        %413 = vmatprep.subr.mxu0 0.0
        %414 = vmatpush2.xpose.msra.mxu0 0.0
        %415 = vmatprep.mubr.f32.mxu0 0.0
        %416 = vmatmul.mubr.f32.gmra.mxu0 %v284
        %v417 = vpop.f32.mrf.mxu0
        %v418 = vadd.f32 0.0, %v417
        %v419 = vpop.f32.mrf.mxu0
        %420 = vdwg.mxu0
        %vm421 = vcmask 121952
        %v422 = vsel %vm421, %v418, -inf
        %423 = vmax.xlane.f32.xlu0 %v422
        %v424 = vpop.xlane.xlu0 %423
        %v425 = vsub.f32 %v418, %v424
        %v426 = vmul.f32 %v425, 1.442695
        %v427 = vpow.pop %v426
        %429 = vrot.lane.b32.xlu0 %v427, 116
        %v430 = vpop.permute.xlu0 %429
        %vm432 = vcmask 23552
        %v433 = vsel %vm432, %v430, 0.0
        %434 = vadd.xlane.f32.xlu0 %v433
        %v435 = vpop.xlane.xlu0 %434
        %v436 = vrcp.pop %v435
        %v437 = vmul.f32 %v435, %v436
        %v438 = vsub.f32 2.0, %v437
        %v439 = vmul.f32 %v436, %v438
        %v440 = vmul.f32 %v427, %v439
        %v441 = vmax.f32 %v418, 0.0
        %442 = vmatprep.subr.mxu0 0.0
        %443 = vmatpush1.xpose.msra.mxu0 %v333
        %444 = vmatprep.subr.mxu0 0.0
        %445 = vmatpush1.xpose.msra.mxu0 %v332
        %446 = vmatprep.subr.mxu0 0.0
        %447 = vmatpush1.xpose.msra.mxu0 %v331
        %448 = vmatprep.subr.mxu0 0.0
        %449 = vmatpush1.xpose.msra.mxu0 %v330
        %450 = vmatprep.subr.mxu0 0.0
        %451 = vmatpush1.xpose.msra.mxu0 %v329
        %452 = vmatprep.subr.mxu0 0.0
        %453 = vmatpush1.xpose.msra.mxu0 %v328
        %454 = vmatprep.subr.mxu0 0.0
        %455 = vmatpush1.xpose.msra.mxu0 %v327
        %456 = vmatprep.subr.mxu0 0.0
        %457 = vmatpush1.xpose.msra.mxu0 %v326
        %458 = vmatprep.subr.mxu0 0.0
        %459 = vmatpush1.xpose.msra.mxu0 %v325
        %460 = vmatprep.subr.mxu0 0.0
        %461 = vmatpush1.xpose.msra.mxu0 %v324
        %462 = vmatprep.subr.mxu0 0.0
        %463 = vmatpush1.xpose.msra.mxu0 %v323
        %464 = vmatprep.subr.mxu0 0.0
        %465 = vmatpush1.xpose.msra.mxu0 %v322
        %466 = vmatprep.subr.mxu0 0.0
        %467 = vmatpush1.xpose.msra.mxu0 %v321
        %468 = vmatprep.subr.mxu0 0.0
        %469 = vmatpush1.xpose.msra.mxu0 %v320
        %470 = vmatprep.subr.mxu0 0.0
        %471 = vmatpush1.xpose.msra.mxu0 %v319
        %472 = vmatprep.subr.mxu0 0.0
        %473 = vmatpush1.xpose.msra.mxu0 %v318
        %474 = vmatprep.subr.mxu0 0.0
        %475 = vmatpush2.xpose.msra.mxu0 0.0
        %476 = vmatprep.subr.mxu0 0.0
        %477 = vmatpush2.xpose.msra.mxu0 0.0
        %478 = vmatprep.subr.mxu0 0.0
        %479 = vmatpush2.xpose.msra.mxu0 0.0
        %480 = vmatprep.subr.mxu0 0.0
        %481 = vmatpush2.xpose.msra.mxu0 0.0
        %482 = vmatprep.subr.mxu0 0.0
        %483 = vmatpush2.xpose.msra.mxu0 0.0
        %484 = vmatprep.subr.mxu0 0.0
        %485 = vmatpush2.xpose.msra.mxu0 0.0
        %486 = vmatprep.subr.mxu0 0.0
        %487 = vmatpush2.xpose.msra.mxu0 0.0
        %488 = vmatprep.subr.mxu0 0.0
        %489 = vmatpush2.xpose.msra.mxu0 0.0
        %490 = vmatprep.subr.mxu0 0.0
        %491 = vmatpush2.xpose.msra.mxu0 0.0
        %492 = vmatprep.subr.mxu0 0.0
        %493 = vmatpush2.xpose.msra.mxu0 0.0
        %494 = vmatprep.subr.mxu0 0.0
        %495 = vmatpush2.xpose.msra.mxu0 0.0
        %496 = vmatprep.subr.mxu0 0.0
        %497 = vmatpush2.xpose.msra.mxu0 0.0
        %498 = vmatprep.subr.mxu0 0.0
        %499 = vmatpush2.xpose.msra.mxu0 0.0
        %500 = vmatprep.subr.mxu0 0.0
        %501 = vmatpush2.xpose.msra.mxu0 0.0
        %502 = vmatprep.subr.mxu0 0.0
        %503 = vmatpush2.xpose.msra.mxu0 0.0
        %504 = vmatprep.subr.mxu0 0.0
        %505 = vmatpush2.xpose.msra.mxu0 0.0
        %506 = vmatprep.mubr.f32.mxu0 0.0
        %507 = vmatmul.mubr.f32.gmra.mxu0 %v441
        %v508 = vpop.f32.mrf.mxu0
        %v509 = vadd.f32 0.0, %v508
        %v510 = vpop.f32.mrf.mxu0
        %511 = vdwg.mxu0
        %v512 = vmax.f32 %v509, 0.0
        %514 = vset.pattern.permute.xlu0 12
        %515 = vperm.xlu0 %514, %v440
        %v516 = vpop.permute.xlu0 %515
        %v518 = vmul.f32 %v291, %v516
        %519 = vset.pattern.permute.xlu0 13
        %520 = vperm.xlu0 %519, %v440
        %v521 = vpop.permute.xlu0 %520
        %v523 = vmul.f32 %v296, %v521
        %v524 = vadd.f32 %v518, %v523
        %525 = vset.pattern.permute.xlu0 14
        %526 = vperm.xlu0 %525, %v440
        %v527 = vpop.permute.xlu0 %526
        %v529 = vmul.f32 %v301, %v527
        %v530 = vadd.f32 %v524, %v529
        %v531 = vmul.f32 %v512, %v530
        %v533 = vlaneseq
        %v534 = vshrl.u32 %v533, 7
        %v535 = vsub.s32 0, %v534
        %v536 = vrot.slane %v350, %v535
        %538 = vmatprep.subr.mxu0 0.0
        %539 = vmatpush1.msra.mxu0 %v349
        %540 = vmatprep.subr.mxu0 0.0
        %541 = vmatpush1.msra.mxu0 %v348
        %542 = vmatprep.subr.mxu0 0.0
        %543 = vmatpush1.msra.mxu0 %v347
        %544 = vmatprep.subr.mxu0 0.0
        %545 = vmatpush1.msra.mxu0 %v346
        %546 = vmatprep.subr.mxu0 0.0
        %547 = vmatpush1.msra.mxu0 %v345
        %548 = vmatprep.subr.mxu0 0.0
        %549 = vmatpush1.msra.mxu0 %v344
        %550 = vmatprep.subr.mxu0 0.0
        %551 = vmatpush1.msra.mxu0 %v343
        %552 = vmatprep.subr.mxu0 0.0
        %553 = vmatpush1.msra.mxu0 %v342
        %554 = vmatprep.subr.mxu0 0.0
        %555 = vmatpush1.msra.mxu0 %v341
        %556 = vmatprep.subr.mxu0 0.0
        %557 = vmatpush1.msra.mxu0 %v340
        %558 = vmatprep.subr.mxu0 0.0
        %559 = vmatpush1.msra.mxu0 %v339
        %560 = vmatprep.subr.mxu0 0.0
        %561 = vmatpush1.msra.mxu0 %v338
        %562 = vmatprep.subr.mxu0 0.0
        %563 = vmatpush1.msra.mxu0 %v337
        %564 = vmatprep.subr.mxu0 0.0
        %565 = vmatpush1.msra.mxu0 %v336
        %566 = vmatprep.subr.mxu0 0.0
        %567 = vmatpush1.msra.mxu0 %v335
        %568 = vmatprep.subr.mxu0 0.0
        %569 = vmatpush1.msra.mxu0 %v334
        %570 = vmatprep.subr.mxu0 0.0
        %571 = vmatpush2.msra.mxu0 0.0
        %572 = vmatprep.subr.mxu0 0.0
        %573 = vmatpush2.msra.mxu0 0.0
        %574 = vmatprep.subr.mxu0 0.0
        %575 = vmatpush2.msra.mxu0 0.0
        %576 = vmatprep.subr.mxu0 0.0
        %577 = vmatpush2.msra.mxu0 0.0
        %578 = vmatprep.subr.mxu0 0.0
        %579 = vmatpush2.msra.mxu0 0.0
        %580 = vmatprep.subr.mxu0 0.0
        %581 = vmatpush2.msra.mxu0 0.0
        %582 = vmatprep.subr.mxu0 0.0
        %583 = vmatpush2.msra.mxu0 0.0
        %584 = vmatprep.subr.mxu0 0.0
        %585 = vmatpush2.msra.mxu0 0.0
        %586 = vmatprep.subr.mxu0 0.0
        %587 = vmatpush2.msra.mxu0 0.0
        %588 = vmatprep.subr.mxu0 0.0
        %589 = vmatpush2.msra.mxu0 0.0
        %590 = vmatprep.subr.mxu0 0.0
        %591 = vmatpush2.msra.mxu0 0.0
        %592 = vmatprep.subr.mxu0 0.0
        %593 = vmatpush2.msra.mxu0 0.0
        %594 = vmatprep.subr.mxu0 0.0
        %595 = vmatpush2.msra.mxu0 0.0
        %596 = vmatprep.subr.mxu0 0.0
        %597 = vmatpush2.msra.mxu0 0.0
        %598 = vmatprep.subr.mxu0 0.0
        %599 = vmatpush2.msra.mxu0 0.0
        %600 = vmatprep.subr.mxu0 0.0
        %601 = vmatpush2.msra.mxu0 0.0
        %602 = vmatprep.mubr.f32.mxu0 0.0
        %603 = vmatmul.mubr.f32.gmra.mxu0 %v531
        %v604 = vpop.f32.mrf.mxu0
        %v605 = vadd.f32 %v536, %v604
        %v606 = vpop.f32.mrf.mxu0
        %607 = vdwg.mxu0
        %v608 = vmul.f32 %v284, %v605
        %v609 = vadd.f32 %v608, %v284
        %s610 = scalar_lea.vmem [#allocation5], 128
        %v611 = vld [vmem:[%s610] sm:$0xff]
        %v612 = vld [vmem:[%s610 + $0x8] sm:$0xff]
        %v613 = vld [vmem:[%s610 + $0x10] sm:$0xff]
        %v614 = vld [vmem:[%s610 + $0x18] sm:$0xff]
        %v615 = vld [vmem:[%s610 + $0x20] sm:$0xff]
        %v616 = vld [vmem:[%s610 + $0x28] sm:$0xff]
        %v617 = vld [vmem:[%s610 + $0x30] sm:$0xff]
        %v618 = vld [vmem:[%s610 + $0x38] sm:$0xff]
        %v619 = vld [vmem:[%s610 + $0x40] sm:$0xff]
        %v620 = vld [vmem:[%s610 + $0x48] sm:$0xff]
        %v621 = vld [vmem:[%s610 + $0x50] sm:$0xff]
        %v622 = vld [vmem:[%s610 + $0x58] sm:$0xff]
        %v623 = vld [vmem:[%s610 + $0x60] sm:$0xff]
        %v624 = vld [vmem:[%s610 + $0x68] sm:$0xff]
        %v625 = vld [vmem:[%s610 + $0x70] sm:$0xff]
        %v626 = vld [vmem:[%s610 + $0x78] sm:$0xff]
        %s627 = scalar_lea.vmem [#allocation7], 128
        %v628 = vld [vmem:[%s627] sm:$0xff]
        %v629 = vld [vmem:[%s627 + $0x8] sm:$0xff]
        %v630 = vld [vmem:[%s627 + $0x10] sm:$0xff]
        %v631 = vld [vmem:[%s627 + $0x18] sm:$0xff]
        %v632 = vld [vmem:[%s627 + $0x20] sm:$0xff]
        %v633 = vld [vmem:[%s627 + $0x28] sm:$0xff]
        %v634 = vld [vmem:[%s627 + $0x30] sm:$0xff]
        %v635 = vld [vmem:[%s627 + $0x38] sm:$0xff]
        %v636 = vld [vmem:[%s627 + $0x40] sm:$0xff]
        %v637 = vld [vmem:[%s627 + $0x48] sm:$0xff]
        %v638 = vld [vmem:[%s627 + $0x50] sm:$0xff]
        %v639 = vld [vmem:[%s627 + $0x58] sm:$0xff]
        %v640 = vld [vmem:[%s627 + $0x60] sm:$0xff]
        %v641 = vld [vmem:[%s627 + $0x68] sm:$0xff]
        %v642 = vld [vmem:[%s627 + $0x70] sm:$0xff]
        %v643 = vld [vmem:[%s627 + $0x78] sm:$0xff]
        %s644 = scalar_lea.vmem [#allocation8], 128
        %v645 = vld [vmem:[%s644] sm:$0xff]
        %v646 = vld [vmem:[%s644 + $0x8] sm:$0xff]
        %v647 = vld [vmem:[%s644 + $0x10] sm:$0xff]
        %v648 = vld [vmem:[%s644 + $0x18] sm:$0xff]
        %v649 = vld [vmem:[%s644 + $0x20] sm:$0xff]
        %v650 = vld [vmem:[%s644 + $0x28] sm:$0xff]
        %v651 = vld [vmem:[%s644 + $0x30] sm:$0xff]
        %v652 = vld [vmem:[%s644 + $0x38] sm:$0xff]
        %v653 = vld [vmem:[%s644 + $0x40] sm:$0xff]
        %v654 = vld [vmem:[%s644 + $0x48] sm:$0xff]
        %v655 = vld [vmem:[%s644 + $0x50] sm:$0xff]
        %v656 = vld [vmem:[%s644 + $0x58] sm:$0xff]
        %v657 = vld [vmem:[%s644 + $0x60] sm:$0xff]
        %v658 = vld [vmem:[%s644 + $0x68] sm:$0xff]
        %v659 = vld [vmem:[%s644 + $0x70] sm:$0xff]
        %v660 = vld [vmem:[%s644 + $0x78] sm:$0xff]
        %s661 = scalar_lea.vmem %s4, 1
        %v662 = vld [vmem:[%s661] sm:$0x1]
        %663 = vmatprep.subr.mxu0 0.0
        %664 = vmatpush1.xpose.msra.mxu0 %v626
        %665 = vmatprep.subr.mxu0 0.0
        %666 = vmatpush1.xpose.msra.mxu0 %v625
        %667 = vmatprep.subr.mxu0 0.0
        %668 = vmatpush1.xpose.msra.mxu0 %v624
        %669 = vmatprep.subr.mxu0 0.0
        %670 = vmatpush1.xpose.msra.mxu0 %v623
        %671 = vmatprep.subr.mxu0 0.0
        %672 = vmatpush1.xpose.msra.mxu0 %v622
        %673 = vmatprep.subr.mxu0 0.0
        %674 = vmatpush1.xpose.msra.mxu0 %v621
        %675 = vmatprep.subr.mxu0 0.0
        %676 = vmatpush1.xpose.msra.mxu0 %v620
        %677 = vmatprep.subr.mxu0 0.0
        %678 = vmatpush1.xpose.msra.mxu0 %v619
        %679 = vmatprep.subr.mxu0 0.0
        %680 = vmatpush1.xpose.msra.mxu0 %v618
        %681 = vmatprep.subr.mxu0 0.0
        %682 = vmatpush1.xpose.msra.mxu0 %v617
        %683 = vmatprep.subr.mxu0 0.0
        %684 = vmatpush1.xpose.msra.mxu0 %v616
        %685 = vmatprep.subr.mxu0 0.0
        %686 = vmatpush1.xpose.msra.mxu0 %v615
        %687 = vmatprep.subr.mxu0 0.0
        %688 = vmatpush1.xpose.msra.mxu0 %v614
        %689 = vmatprep.subr.mxu0 0.0
        %690 = vmatpush1.xpose.msra.mxu0 %v613
        %691 = vmatprep.subr.mxu0 0.0
        %692 = vmatpush1.xpose.msra.mxu0 %v612
        %693 = vmatprep.subr.mxu0 0.0
        %694 = vmatpush1.xpose.msra.mxu0 %v611
        %695 = vmatprep.subr.mxu0 0.0
        %696 = vmatpush2.xpose.msra.mxu0 0.0
        %697 = vmatprep.subr.mxu0 0.0
        %698 = vmatpush2.xpose.msra.mxu0 0.0
        %699 = vmatprep.subr.mxu0 0.0
        %700 = vmatpush2.xpose.msra.mxu0 0.0
        %701 = vmatprep.subr.mxu0 0.0
        %702 = vmatpush2.xpose.msra.mxu0 0.0
        %703 = vmatprep.subr.mxu0 0.0
        %704 = vmatpush2.xpose.msra.mxu0 0.0
        %705 = vmatprep.subr.mxu0 0.0
        %706 = vmatpush2.xpose.msra.mxu0 0.0
        %707 = vmatprep.subr.mxu0 0.0
        %708 = vmatpush2.xpose.msra.mxu0 0.0
        %709 = vmatprep.subr.mxu0 0.0
        %710 = vmatpush2.xpose.msra.mxu0 0.0
        %711 = vmatprep.subr.mxu0 0.0
        %712 = vmatpush2.xpose.msra.mxu0 0.0
        %713 = vmatprep.subr.mxu0 0.0
        %714 = vmatpush2.xpose.msra.mxu0 0.0
        %715 = vmatprep.subr.mxu0 0.0
        %716 = vmatpush2.xpose.msra.mxu0 0.0
        %717 = vmatprep.subr.mxu0 0.0
        %718 = vmatpush2.xpose.msra.mxu0 0.0
        %719 = vmatprep.subr.mxu0 0.0
        %720 = vmatpush2.xpose.msra.mxu0 0.0
        %721 = vmatprep.subr.mxu0 0.0
        %722 = vmatpush2.xpose.msra.mxu0 0.0
        %723 = vmatprep.subr.mxu0 0.0
        %724 = vmatpush2.xpose.msra.mxu0 0.0
        %725 = vmatprep.subr.mxu0 0.0
        %726 = vmatpush2.xpose.msra.mxu0 0.0
        %727 = vmatprep.mubr.f32.mxu0 0.0
        %728 = vmatmul.mubr.f32.gmra.mxu0 %v609
        %v729 = vpop.f32.mrf.mxu0
        %v730 = vadd.f32 0.0, %v729
        %v731 = vpop.f32.mrf.mxu0
        %732 = vdwg.mxu0
        %v733 = vsel %vm421, %v730, -inf
        %734 = vmax.xlane.f32.xlu0 %v733
        %v735 = vpop.xlane.xlu0 %734
        %v736 = vsub.f32 %v730, %v735
        %v737 = vmul.f32 %v736, 1.442695
        %v738 = vpow.pop %v737
        %740 = vrot.lane.b32.xlu0 %v738, 116
        %v741 = vpop.permute.xlu0 %740
        %v743 = vsel %vm432, %v741, 0.0
        %744 = vadd.xlane.f32.xlu0 %v743
        %v745 = vpop.xlane.xlu0 %744
        %v746 = vrcp.pop %v745
        %v747 = vmul.f32 %v745, %v746
        %v748 = vsub.f32 2.0, %v747
        %v749 = vmul.f32 %v746, %v748
        %v750 = vmul.f32 %v738, %v749
        %v751 = vmax.f32 %v730, 0.0
        %752 = vmatprep.subr.mxu0 0.0
        %753 = vmatpush1.xpose.msra.mxu0 %v643
        %754 = vmatprep.subr.mxu0 0.0
        %755 = vmatpush1.xpose.msra.mxu0 %v642
        %756 = vmatprep.subr.mxu0 0.0
        %757 = vmatpush1.xpose.msra.mxu0 %v641
        %758 = vmatprep.subr.mxu0 0.0
        %759 = vmatpush1.xpose.msra.mxu0 %v640
        %760 = vmatprep.subr.mxu0 0.0
        %761 = vmatpush1.xpose.msra.mxu0 %v639
        %762 = vmatprep.subr.mxu0 0.0
        %763 = vmatpush1.xpose.msra.mxu0 %v638
        %764 = vmatprep.subr.mxu0 0.0
        %765 = vmatpush1.xpose.msra.mxu0 %v637
        %766 = vmatprep.subr.mxu0 0.0
        %767 = vmatpush1.xpose.msra.mxu0 %v636
        %768 = vmatprep.subr.mxu0 0.0
        %769 = vmatpush1.xpose.msra.mxu0 %v635
        %770 = vmatprep.subr.mxu0 0.0
        %771 = vmatpush1.xpose.msra.mxu0 %v634
        %772 = vmatprep.subr.mxu0 0.0
        %773 = vmatpush1.xpose.msra.mxu0 %v633
        %774 = vmatprep.subr.mxu0 0.0
        %775 = vmatpush1.xpose.msra.mxu0 %v632
        %776 = vmatprep.subr.mxu0 0.0
        %777 = vmatpush1.xpose.msra.mxu0 %v631
        %778 = vmatprep.subr.mxu0 0.0
        %779 = vmatpush1.xpose.msra.mxu0 %v630
        %780 = vmatprep.subr.mxu0 0.0
        %781 = vmatpush1.xpose.msra.mxu0 %v629
        %782 = vmatprep.subr.mxu0 0.0
        %783 = vmatpush1.xpose.msra.mxu0 %v628
        %784 = vmatprep.subr.mxu0 0.0
        %785 = vmatpush2.xpose.msra.mxu0 0.0
        %786 = vmatprep.subr.mxu0 0.0
        %787 = vmatpush2.xpose.msra.mxu0 0.0
        %788 = vmatprep.subr.mxu0 0.0
        %789 = vmatpush2.xpose.msra.mxu0 0.0
        %790 = vmatprep.subr.mxu0 0.0
        %791 = vmatpush2.xpose.msra.mxu0 0.0
        %792 = vmatprep.subr.mxu0 0.0
        %793 = vmatpush2.xpose.msra.mxu0 0.0
        %794 = vmatprep.subr.mxu0 0.0
        %795 = vmatpush2.xpose.msra.mxu0 0.0
        %796 = vmatprep.subr.mxu0 0.0
        %797 = vmatpush2.xpose.msra.mxu0 0.0
        %798 = vmatprep.subr.mxu0 0.0
        %799 = vmatpush2.xpose.msra.mxu0 0.0
        %800 = vmatprep.subr.mxu0 0.0
        %801 = vmatpush2.xpose.msra.mxu0 0.0
        %802 = vmatprep.subr.mxu0 0.0
        %803 = vmatpush2.xpose.msra.mxu0 0.0
        %804 = vmatprep.subr.mxu0 0.0
        %805 = vmatpush2.xpose.msra.mxu0 0.0
        %806 = vmatprep.subr.mxu0 0.0
        %807 = vmatpush2.xpose.msra.mxu0 0.0
        %808 = vmatprep.subr.mxu0 0.0
        %809 = vmatpush2.xpose.msra.mxu0 0.0
        %810 = vmatprep.subr.mxu0 0.0
        %811 = vmatpush2.xpose.msra.mxu0 0.0
        %812 = vmatprep.subr.mxu0 0.0
        %813 = vmatpush2.xpose.msra.mxu0 0.0
        %814 = vmatprep.subr.mxu0 0.0
        %815 = vmatpush2.xpose.msra.mxu0 0.0
        %816 = vmatprep.mubr.f32.mxu0 0.0
        %817 = vmatmul.mubr.f32.gmra.mxu0 %v751
        %v818 = vpop.f32.mrf.mxu0
        %v819 = vadd.f32 0.0, %v818
        %v820 = vpop.f32.mrf.mxu0
        %821 = vdwg.mxu0
        %v822 = vmax.f32 %v819, 0.0
        %824 = vset.pattern.permute.xlu0 12
        %825 = vperm.xlu0 %824, %v750
        %v826 = vpop.permute.xlu0 %825
        %v828 = vmul.f32 %v291, %v826
        %829 = vset.pattern.permute.xlu0 13
        %830 = vperm.xlu0 %829, %v750
        %v831 = vpop.permute.xlu0 %830
        %v833 = vmul.f32 %v296, %v831
        %v834 = vadd.f32 %v828, %v833
        %835 = vset.pattern.permute.xlu0 14
        %836 = vperm.xlu0 %835, %v750
        %v837 = vpop.permute.xlu0 %836
        %v839 = vmul.f32 %v301, %v837
        %v840 = vadd.f32 %v834, %v839
        %v841 = vmul.f32 %v822, %v840
        %v843 = vlaneseq
        %v844 = vshrl.u32 %v843, 7
        %v845 = vsub.s32 0, %v844
        %v846 = vrot.slane %v662, %v845
        %848 = vmatprep.subr.mxu0 0.0
        %849 = vmatpush1.msra.mxu0 %v660
        %850 = vmatprep.subr.mxu0 0.0
        %851 = vmatpush1.msra.mxu0 %v659
        %852 = vmatprep.subr.mxu0 0.0
        %853 = vmatpush1.msra.mxu0 %v658
        %854 = vmatprep.subr.mxu0 0.0
        %855 = vmatpush1.msra.mxu0 %v657
        %856 = vmatprep.subr.mxu0 0.0
        %857 = vmatpush1.msra.mxu0 %v656
        %858 = vmatprep.subr.mxu0 0.0
        %859 = vmatpush1.msra.mxu0 %v655
        %860 = vmatprep.subr.mxu0 0.0
        %861 = vmatpush1.msra.mxu0 %v654
        %862 = vmatprep.subr.mxu0 0.0
        %863 = vmatpush1.msra.mxu0 %v653
        %864 = vmatprep.subr.mxu0 0.0
        %865 = vmatpush1.msra.mxu0 %v652
        %866 = vmatprep.subr.mxu0 0.0
        %867 = vmatpush1.msra.mxu0 %v651
        %868 = vmatprep.subr.mxu0 0.0
        %869 = vmatpush1.msra.mxu0 %v650
        %870 = vmatprep.subr.mxu0 0.0
        %871 = vmatpush1.msra.mxu0 %v649
        %872 = vmatprep.subr.mxu0 0.0
        %873 = vmatpush1.msra.mxu0 %v648
        %874 = vmatprep.subr.mxu0 0.0
        %875 = vmatpush1.msra.mxu0 %v647
        %876 = vmatprep.subr.mxu0 0.0
        %877 = vmatpush1.msra.mxu0 %v646
        %878 = vmatprep.subr.mxu0 0.0
        %879 = vmatpush1.msra.mxu0 %v645
        %880 = vmatprep.subr.mxu0 0.0
        %881 = vmatpush2.msra.mxu0 0.0
        %882 = vmatprep.subr.mxu0 0.0
        %883 = vmatpush2.msra.mxu0 0.0
        %884 = vmatprep.subr.mxu0 0.0
        %885 = vmatpush2.msra.mxu0 0.0
        %886 = vmatprep.subr.mxu0 0.0
        %887 = vmatpush2.msra.mxu0 0.0
        %888 = vmatprep.subr.mxu0 0.0
        %889 = vmatpush2.msra.mxu0 0.0
        %890 = vmatprep.subr.mxu0 0.0
        %891 = vmatpush2.msra.mxu0 0.0
        %892 = vmatprep.subr.mxu0 0.0
        %893 = vmatpush2.msra.mxu0 0.0
        %894 = vmatprep.subr.mxu0 0.0
        %895 = vmatpush2.msra.mxu0 0.0
        %896 = vmatprep.subr.mxu0 0.0
        %897 = vmatpush2.msra.mxu0 0.0
        %898 = vmatprep.subr.mxu0 0.0
        %899 = vmatpush2.msra.mxu0 0.0
        %900 = vmatprep.subr.mxu0 0.0
        %901 = vmatpush2.msra.mxu0 0.0
        %902 = vmatprep.subr.mxu0 0.0
        %903 = vmatpush2.msra.mxu0 0.0
        %904 = vmatprep.subr.mxu0 0.0
        %905 = vmatpush2.msra.mxu0 0.0
        %906 = vmatprep.subr.mxu0 0.0
        %907 = vmatpush2.msra.mxu0 0.0
        %908 = vmatprep.subr.mxu0 0.0
        %909 = vmatpush2.msra.mxu0 0.0
        %910 = vmatprep.subr.mxu0 0.0
        %911 = vmatpush2.msra.mxu0 0.0
        %912 = vmatprep.mubr.f32.mxu0 0.0
        %913 = vmatmul.mubr.f32.gmra.mxu0 %v841
        %v914 = vpop.f32.mrf.mxu0
        %v915 = vadd.f32 %v846, %v914
        %v916 = vpop.f32.mrf.mxu0
        %917 = vdwg.mxu0
        %v918 = vmul.f32 %v284, %v915
        %v919 = vadd.f32 %v918, %v609
        %920 = vst [vmem:[%s283] sm:$0xff] %v919
        %s921 = sand.u32 %s142, 1
        %s922 = scalar_lea.sflag [#allocation4], %s921
        %s923 = sand.u32 %s142, 1
        %s924 = smul.addr %s923, 8
        %s925 = scalar_lea.vmem [#allocation10], %s924
        // Predicated region
        $region57: #{tpu_custom_call.1} parent=39 // pred_check
          %p926 = pneg %p152
        $region58: #{tpu_custom_call.1} parent=39 // pred_check_branch
          %928 = sbr.rel (%p926) target = $region60
        $region59: #{tpu_custom_call.1} parent=39 // pred_region
          %s930 = ssub.s32 128, 128
          %931 = vsyncadd %s922, %s930
          %s932 = smul.addr %s24, 128
          %s933 = scalar_lea.hbm %s5, %s932
          %s935 = sshll.u32 %s925, 4
          %s936 = int_to_ptr.vmem [resolvable:$true] %s935
          %938 = dma.vmem_to_hbm [thread:$0]  %s936, 128, %s933, %s922
        $region60: #{tpu_custom_call.1} parent=39 // pred_fallthru
          _
      $region40: #{tpu_custom_call.1} parent=5 // pred_fallthru
        _
      %p939 = scmp.le.s32.totalorder 2, %s19
      // Predicated region
      $region61: #{tpu_custom_call.1} parent=5 // pred_check
        %p940 = pneg %p939
      $region62: #{tpu_custom_call.1} parent=5 // pred_check_branch
        %942 = sbr.rel (%p940) target = $region64
      $region63: #{tpu_custom_call.1} parent=5 // pred_region
        %s943 = ssub.s32 %s19, 2
        // Predicated region
        $region65: #{tpu_custom_call.1} parent=63 // pred_check
          %p944 = pneg %p158
        $region66: #{tpu_custom_call.1} parent=63 // pred_check_branch
          %946 = sbr.rel (%p944) target = $region68
        $region67: #{tpu_custom_call.1} parent=63 // pred_region
          %s947 = sand.u32 %s143, 1
          %s948 = scalar_lea.sflag [#allocation4], %s947
          %s949 = sand.u32 %s143, 1
          %s950 = smul.addr %s949, 8
          %s951 = scalar_lea.vmem [#allocation10], %s950
          %952 = dma.done %s948, 128
        $region68: #{tpu_custom_call.1} parent=63 // pred_fallthru
          _
      $region64: #{tpu_custom_call.1} parent=5 // pred_fallthru
        _
    $region6: #{tpu_custom_call.1} parent=1 // loop_footer
      %s23 = sadd.s32 1, %s19
    $region7: #{tpu_custom_call.1} parent=1 // loop_footer_branch
      %18 = sbr.rel target = $region3
    $region8: #{tpu_custom_call.1} parent=1 // loop_exit
      _
    %953 = vsyncpa [#allocation3], 1
    %s954 = scalar_lea.sflag [#allocation3], 1
    %955 = vsyncpa %s954, 1
    %956 = vsyncpa [#allocation6], 1
    %957 = vsyncpa [#allocation9], 1
    %958 = vsyncpa [#allocation4], 1
    %s959 = scalar_lea.sflag [#allocation4], 1
    %960 = vsyncpa %s959, 1

</llo_original>
